<compile_context>
chip_gen: v7x
topology: tpu7x:2x2x1
jax: 0.10.0
libtpu: 0.0.40
codegen_flags: <defaults>
</compile_context>

<pallas_src>
import functools

import jax
import jax.numpy as jnp
from jax.experimental import pallas as pl
from jax.experimental.pallas import tpu as pltpu

LANE = 128      # lane width: channel axes are padded to multiples of this
SUBLANE = 8     # sublane width: the time axis is padded to multiples of this


def _round_up(x, m):
    return (x + m - 1) // m * m


# ----------------------------------------------------------------------------
# Kernel
# ----------------------------------------------------------------------------
def _temporal_block_kernel(*refs, NB, Lp, CPI, CPO, K, DIL,
                           apply_downsample, compute_dtype):
    if apply_downsample:
        (x_ref, scale1_ref, shift1_ref, w1_ref, b1_ref,
         scale2_ref, shift2_ref, w2_ref, b2_ref, bd_ref, o_ref) = refs
    else:
        (x_ref, scale1_ref, shift1_ref, w1_ref, b1_ref,
         scale2_ref, shift2_ref, w2_ref, b2_ref, o_ref) = refs
        bd_ref = None

    rows = NB * Lp
    # Free re-tile: Lp % 8 == 0 and CPI % 128 == 0.
    x2d = x_ref[...].reshape(rows, CPI)

    # Time index within each sample (rows = NB contiguous blocks of Lp steps);
    # computed once and reused by both convs for the causal masks.
    t_idx = jax.lax.broadcasted_iota(jnp.int32, (NB, Lp, CPO), 1).reshape(rows, CPO)

    def causal_dilated_conv(h2d, w_ref, b_ref, with_residual):
        # All K taps (plus, for conv1, the folded 1x1 downsample) in ONE MXU
        # matmul: bf16 operands, f32 accumulation, 128-lane aligned columns.
        y = jnp.dot(h2d.astype(compute_dtype), w_ref[...],
                    preferred_element_type=jnp.float32)      # (rows, nblk*CPO)
        acc = y[:, 0:CPO]                                     # tap s=0: no shift
        for s in range(1, K):
            shift = s * DIL
            if shift >= Lp:           # tap only ever reads the causal pad -> 0
                continue
            # Tap block s holds weight tap (K-1-s); the causal dilation moves
            # its contribution shift steps forward in time.  The roll is on the
            # flattened row axis; rows whose source would come from the causal
            # pad (or the previous batch element) are masked to zero.
            blk = y[:, s * CPO:(s + 1) * CPO]                 # whole-vreg slice
            shifted = pltpu.roll(blk, shift=shift % rows, axis=0)
            acc = acc + jnp.where(t_idx >= shift, shifted, 0.0)
        out = acc + b_ref[...]                                # bias added once
        res = y[:, K * CPO:(K + 1) * CPO] if with_residual else None
        return out, res

    # BN1 (eval, folded) -> causal conv1 (+ folded 1x1 downsample) -> chomp -> ReLU
    h1 = x2d * scale1_ref[...] + shift1_ref[...]
    c1, res2d = causal_dilated_conv(h1, w1_ref, b1_ref, apply_downsample)
    a1 = jnp.maximum(c1, 0.0)

    # BN2 (eval, folded) -> causal conv2 -> chomp -> ReLU   (dropout = identity)
    h2 = a1 * scale2_ref[...] + shift2_ref[...]
    c2, _ = causal_dilated_conv(h2, w2_ref, b2_ref, False)
    a2 = jnp.maximum(c2, 0.0)

    # Residual: folded 1x1 downsample (shares the conv1 matmul) or identity.
    res2d = (res2d + bd_ref[...]) if apply_downsample else x2d

    o_ref[...] = jnp.maximum(a2 + res2d, 0.0).reshape(NB, Lp, CPO).astype(o_ref.dtype)


# ----------------------------------------------------------------------------
# Wrapper
# ----------------------------------------------------------------------------
def _pick_batch_block(N, Lp, cpi, cpo, nblk1, K, budget_bytes):
    """Largest batch chunk whose f32 working set fits the VMEM budget, while
    keeping >= 2 grid steps when possible (two v7x TensorCores + DMA
    double-buffering of the x/out blocks)."""
    def est_bytes(nb):
        rows = nb * Lp
        io = 2 * 2 * rows * (cpi + cpo) * 4                 # double-buffered x / out
        live = rows * (cpi + (nblk1 + 2 * K + 4) * cpo) * 4  # matmul results, acts, masks
        return io + live

    divisors = [d for d in range(1, N + 1) if N % d == 0]
    fitting = [d for d in divisors if est_bytes(d) <= budget_bytes] or [1]
    multi = [d for d in fitting if N // d >= 2]
    return max(multi) if multi else max(fitting)


def temporal_block_forward(x, params, *, kernel_size, dilation, padding,
                           channels_last=False, batch_block=None,
                           compute_dtype=jnp.bfloat16,
                           vmem_limit_bytes=48 * 1024 * 1024):
    """Fused TemporalBlock forward (eval mode).

    x: (N, C_in, L) float32 (PyTorch NCL), or (N, L, C_in) if channels_last
       (preferred on v5e: skips the two host-side HBM transpose passes).
    Returns the same layout with C_out channels.
    """
    meta = params["meta"]
    K, DIL, PAD = kernel_size, dilation, padding
    if PAD != (K - 1) * DIL:
        # TODO(synk): general padding/chomp combinations; a TCN always uses
        #             padding = (kernel_size - 1) * dilation.
        raise NotImplementedError("expected padding == (kernel_size-1)*dilation")
    if K != meta["k"]:
        raise ValueError("kernel_size mismatch with packed params")

    x_nlc = x if channels_last else jnp.transpose(x, (0, 2, 1))   # (N, L, C_in)
    N, L, c_in = x_nlc.shape
    if c_in != meta["c_in"]:
        raise ValueError("input channel count mismatch with packed params")
    c_out, cpi, cpo = meta["c_out"], meta["cpi"], meta["cpo"]
    downsample = meta["downsample"]
    nblk1 = K + (1 if downsample else 0)

    # Pad time to a sublane multiple (free reshapes) and channels to lane width.
    Lp = _round_up(L, SUBLANE)
    x_p = jnp.pad(x_nlc, ((0, 0), (0, Lp - L), (0, cpi - c_in)))

    if batch_block is None:
        NB = _pick_batch_block(N, Lp, cpi, cpo, nblk1, K,
                               budget_bytes=int(0.75 * vmem_limit_bytes))
    else:
        NB = batch_block
        if N % NB != 0:
            raise ValueError("batch_block must divide the batch size")
    # TODO(synk): for very long sequences (L in the many thousands) tile L with
    #             a PAD-row halo (conv2 needs PAD rows of a1 from the previous
    #             tile) instead of relying on batch chunking alone.

    w1 = params["w1"].astype(compute_dtype)
    w2 = params["w2"].astype(compute_dtype)

    kern = functools.partial(
        _temporal_block_kernel, NB=NB, Lp=Lp, CPI=cpi, CPO=cpo, K=K, DIL=DIL,
        apply_downsample=downsample, compute_dtype=compute_dtype)

    def rep(shape):   # replicated (parameter) blocks: same full block every step
        return pl.BlockSpec(shape, lambda i: (0,) * len(shape))

    inputs = [x_p, params["scale1"], params["shift1"], w1, params["b1"],
              params["scale2"], params["shift2"], w2, params["b2"]]
    in_specs = [
        pl.BlockSpec((NB, Lp, cpi), lambda i: (i, 0, 0)),
        rep((1, cpi)), rep((1, cpi)),
        rep((cpi, nblk1 * cpo)), rep((1, cpo)),
        rep((1, cpo)), rep((1, cpo)),
        rep((cpo, K * cpo)), rep((1, cpo)),
    ]
    if downsample:
        inputs.append(params["bd"])
        in_specs.append(rep((1, cpo)))

    flops = 2 * N * Lp * (cpi * nblk1 * cpo + cpo * K * cpo)
    bytes_accessed = int(x_p.size) * 4 + N * Lp * cpo * 4 + sum(
        int(a.size) * a.dtype.itemsize for a in inputs[1:])

    out_nlc = pl.pallas_call(
        kern,
        out_shape=jax.ShapeDtypeStruct((N, Lp, cpo), jnp.float32),
        grid=(N // NB,),
        in_specs=in_specs,
        out_specs=pl.BlockSpec((NB, Lp, cpo), lambda i: (i, 0, 0)),
        compiler_params=pltpu.CompilerParams(
            dimension_semantics=("parallel",),
            vmem_limit_bytes=vmem_limit_bytes),
        cost_estimate=pl.CostEstimate(
            flops=flops, transcendentals=0, bytes_accessed=bytes_accessed),
    )(*inputs)

    out_nlc = out_nlc[:, :L, :c_out]
    return out_nlc if channels_last else jnp.transpose(out_nlc, (0, 2, 1))


# ----------------------------------------------------------------------------
# Parameter construction (synthetic, deterministic) + host-side packing.
# ----------------------------------------------------------------------------
def _weight_norm(v, g):
    # torch.nn.utils.weight_norm with dim=0: w[o] = g[o] * v[o] / ||v[o]||_2
    norm = jnp.sqrt(jnp.sum(v * v, axis=(1, 2), keepdims=True))
    return g[:, None, None] * v / norm


def make_raw_params(key, n_inputs, n_outputs, kernel_size):
    """Raw parameters in PyTorch layout (conv weights are (C_out, C_in, K))."""
    ks = jax.random.split(key, 12)
    raw = dict(
        bn1_gamma=jnp.ones((n_inputs,), jnp.float32),
        bn1_beta=jnp.zeros((n_inputs,), jnp.float32),
        bn1_mean=0.1 * jax.random.normal(ks[0], (n_inputs,), jnp.float32),
        bn1_var=1.0 + 0.1 * jax.random.uniform(ks[1], (n_inputs,), jnp.float32),
        conv1_v=0.3 * jax.random.normal(ks[2], (n_outputs, n_inputs, kernel_size), jnp.float32),
        conv1_g=1.0 + 0.1 * jax.random.normal(ks[3], (n_outputs,), jnp.float32),
        conv1_b=0.05 * jax.random.normal(ks[4], (n_outputs,), jnp.float32),
        bn2_gamma=jnp.ones((n_outputs,), jnp.float32),
        bn2_beta=jnp.zeros((n_outputs,), jnp.float32),
        bn2_mean=0.1 * jax.random.normal(ks[5], (n_outputs,), jnp.float32),
        bn2_var=1.0 + 0.1 * jax.random.uniform(ks[6], (n_outputs,), jnp.float32),
        conv2_v=0.3 * jax.random.normal(ks[7], (n_outputs, n_outputs, kernel_size), jnp.float32),
        conv2_g=1.0 + 0.1 * jax.random.normal(ks[8], (n_outputs,), jnp.float32),
        conv2_b=0.05 * jax.random.normal(ks[9], (n_outputs,), jnp.float32),
    )
    if n_inputs != n_outputs:   # downsample exists only when shapes differ
        raw["down_w"] = jax.random.normal(
            ks[10], (n_outputs, n_inputs), jnp.float32) * jnp.sqrt(2.0 / n_inputs)
        raw["down_b"] = jnp.zeros((n_outputs,), jnp.float32)
    return raw


def _pad2(a, rows, cols):
    return jnp.pad(a, ((0, rows - a.shape[0]), (0, cols - a.shape[1])))


def pack_params(raw, *, kernel_size, eps=1e-5):
    """Fold eval-mode BN into scale/shift, merge conv taps (and the 1x1
    downsample) into lane-padded weight column blocks for the kernel."""
    K = kernel_size
    c_out, c_in = raw["conv1_v"].shape[0], raw["conv1_v"].shape[1]
    cpi, cpo = _round_up(c_in, LANE), _round_up(c_out, LANE)

    def fold_bn(gamma, beta, mean, var):
        scale = gamma / jnp.sqrt(var + eps)
        return scale, beta - mean * scale

    s1, sh1 = fold_bn(raw["bn1_gamma"], raw["bn1_beta"], raw["bn1_mean"], raw["bn1_var"])
    s2, sh2 = fold_bn(raw["bn2_gamma"], raw["bn2_beta"], raw["bn2_mean"], raw["bn2_var"])
    w1 = _weight_norm(raw["conv1_v"], raw["conv1_g"])     # (c_out, c_in, K)
    w2 = _weight_norm(raw["conv2_v"], raw["conv2_g"])     # (c_out, c_out, K)

    def tap_blocks(w, rows, cols):
        # Column block s multiplies the current time step and is shifted by
        # s*dilation on the result path, i.e. it carries weight tap (K-1-s).
        k = w.shape[-1]
        return [_pad2(w[:, :, k - 1 - s].T, rows, cols) for s in range(k)]

    blocks1 = tap_blocks(w1, cpi, cpo)
    downsample = "down_w" in raw
    if downsample:
        wd = raw["down_w"].T                                # (c_in, c_out)
        # Fold BN1 into the 1x1 downsample so it can share the conv1 matmul:
        #   res = x @ wd + bd,  h1 = x*s1 + sh1
        #   => res = h1 @ (wd / s1) + (bd - (sh1/s1) @ wd)
        # TODO(synk): guard degenerate BN gammas (|s1| ~ 0); safe for the
        #             module's init (gamma=1) and normal running stats.
        blocks1.append(_pad2(wd / s1[:, None], cpi, cpo))
        bdp = raw["down_b"] - (sh1 / s1) @ wd

    def pad_scale_shift(scale, shift, width):
        scale_p = jnp.pad(scale, (0, width - scale.shape[0]), constant_values=1.0)
        shift_p = jnp.pad(shift, (0, width - shift.shape[0]))
        return scale_p[None, :], shift_p[None, :]

    scale1, shift1 = pad_scale_shift(s1, sh1, cpi)
    scale2, shift2 = pad_scale_shift(s2, sh2, cpo)

    p = {
        "scale1": scale1, "shift1": shift1,
        "w1": jnp.concatenate(blocks1, axis=1),                    # (cpi, nblk1*cpo)
        "b1": jnp.pad(raw["conv1_b"], (0, cpo - c_out))[None, :],
        "scale2": scale2, "shift2": shift2,
        "w2": jnp.concatenate(tap_blocks(w2, cpo, cpo), axis=1),   # (cpo, K*cpo)
        "b2": jnp.pad(raw["conv2_b"], (0, cpo - c_out))[None, :],
        "meta": dict(c_in=c_in, c_out=c_out, cpi=cpi, cpo=cpo, k=K,
                     downsample=downsample),
    }
    if downsample:
        p["bd"] = jnp.pad(bdp, (0, cpo - c_out))[None, :]
    return p


# ----------------------------------------------------------------------------
# Pure-JAX reference (eval-mode TemporalBlock) for correctness checking.
# ----------------------------------------------------------------------------
def reference_forward(x_ncl, raw, *, kernel_size, dilation, padding, eps=1e-5):
    K, DIL, PAD = kernel_size, dilation, padding
    hp = jax.lax.Precision.HIGHEST

    def bn(x, g, b, m, v):
        return ((x - m[None, :, None]) / jnp.sqrt(v[None, :, None] + eps)
                * g[None, :, None] + b[None, :, None])

    def causal_conv(x, w, b):            # x: (N, C, L), w: (C_out, C, K)
        length = x.shape[-1]
        xp = jnp.pad(x, ((0, 0), (0, 0), (PAD, 0)))
        out = jnp.zeros((x.shape[0], w.shape[0], length), jnp.float32) + b[None, :, None]
        for t in range(K):
            out = out + jnp.einsum("ncl,dc->ndl",
                                   xp[:, :, t * DIL:t * DIL + length],
                                   w[:, :, t], precision=hp)
        return out

    w1 = _weight_norm(raw["conv1_v"], raw["conv1_g"])
    w2 = _weight_norm(raw["conv2_v"], raw["conv2_g"])
    h = bn(x_ncl, raw["bn1_gamma"], raw["bn1_beta"], raw["bn1_mean"], raw["bn1_var"])
    h = jax.nn.relu(causal_conv(h, w1, raw["conv1_b"]))
    h = bn(h, raw["bn2_gamma"], raw["bn2_beta"], raw["bn2_mean"], raw["bn2_var"])
    out = jax.nn.relu(causal_conv(h, w2, raw["conv2_b"]))
    if "down_w" in raw:
        res = (jnp.einsum("ncl,dc->ndl", x_ncl, raw["down_w"], precision=hp)
               + raw["down_b"][None, :, None])
    else:
        res = x_ncl
    return jax.nn.relu(out + res)


if __name__ == "__main__":
    # Module config: TemporalBlock(n_inputs=8, n_outputs=16, kernel_size=3,
    #                              stride=1, dilation=2, padding=(3-1)*2=4)
    N, C_IN, C_OUT, L = 2, 8, 16, 32
    K, DIL = 3, 2
    PAD = (K - 1) * DIL

    key = jax.random.PRNGKey(0)
    kx, kp = jax.random.split(key)
    x = jax.random.normal(kx, (N, C_IN, L), jnp.float32)     # PyTorch NCL input

    raw = make_raw_params(kp, C_IN, C_OUT, K)
    params = pack_params(raw, kernel_size=K)

    ref = jax.block_until_ready(
        reference_forward(x, raw, kernel_size=K, dilation=DIL, padding=PAD))

    # Semantics check with f32 matmul operands.
    out_f32 = jax.block_until_ready(
        temporal_block_forward(x, params, kernel_size=K, dilation=DIL,
                               padding=PAD, compute_dtype=jnp.float32))
    assert out_f32.shape == (N, C_OUT, L) and out_f32.dtype == jnp.float32
    assert bool(jnp.all(jnp.isfinite(out_f32)))
    err32 = float(jnp.max(jnp.abs(out_f32 - ref)))
    assert jnp.allclose(out_f32, ref, rtol=2e-2, atol=2e-2), f"f32 max abs err {err32}"

    # Default (performance) path: bf16 MXU operands, f32 accumulation.
    out_bf16 = jax.block_until_ready(
        temporal_block_forward(x, params, kernel_size=K, dilation=DIL, padding=PAD))
    assert out_bf16.shape == (N, C_OUT, L) and out_bf16.dtype == jnp.float32
    assert bool(jnp.all(jnp.isfinite(out_bf16)))
    err16 = float(jnp.max(jnp.abs(out_bf16 - ref)))
    assert jnp.allclose(out_bf16, ref, rtol=5e-2, atol=1e-1), f"bf16 max abs err {err16}"

    print("KERNEL_OK")
</pallas_src>

<mosaic_0001>
module attributes {stable_mosaic.version = 11 : i64} {
  func.func @_temporal_block_kernel(%arg0: i32, %arg1: memref<1x32x128xf32, #tpu.memory_space<vmem>>, %arg2: memref<1x128xf32, #tpu.memory_space<vmem>>, %arg3: memref<1x128xf32, #tpu.memory_space<vmem>>, %arg4: memref<128x512xf32, #tpu.memory_space<vmem>>, %arg5: memref<1x128xf32, #tpu.memory_space<vmem>>, %arg6: memref<1x128xf32, #tpu.memory_space<vmem>>, %arg7: memref<1x128xf32, #tpu.memory_space<vmem>>, %arg8: memref<128x384xf32, #tpu.memory_space<vmem>>, %arg9: memref<1x128xf32, #tpu.memory_space<vmem>>, %arg10: memref<1x128xf32, #tpu.memory_space<vmem>>, %arg11: memref<1x32x128xf32, #tpu.memory_space<vmem>>) attributes {dimension_semantics = [#tpu.dimension_semantics<parallel>], iteration_bounds = array<i64: 2>, scalar_prefetch = 0 : i64, scratch_operands = 0 : i64, tpu.core_type = #tpu.core_type<tc>, window_params = [{transform_indices = @transform_0, window_bounds = array<i64: 1, 32, 128>}, {pipeline_mode = #tpu.pipeline_mode<synchronous>, transform_indices = @transform_1, window_bounds = array<i64: 1, 128>}, {pipeline_mode = #tpu.pipeline_mode<synchronous>, transform_indices = @transform_2, window_bounds = array<i64: 1, 128>}, {pipeline_mode = #tpu.pipeline_mode<synchronous>, transform_indices = @transform_3, window_bounds = array<i64: 128, 512>}, {pipeline_mode = #tpu.pipeline_mode<synchronous>, transform_indices = @transform_4, window_bounds = array<i64: 1, 128>}, {pipeline_mode = #tpu.pipeline_mode<synchronous>, transform_indices = @transform_5, window_bounds = array<i64: 1, 128>}, {pipeline_mode = #tpu.pipeline_mode<synchronous>, transform_indices = @transform_6, window_bounds = array<i64: 1, 128>}, {pipeline_mode = #tpu.pipeline_mode<synchronous>, transform_indices = @transform_7, window_bounds = array<i64: 128, 384>}, {pipeline_mode = #tpu.pipeline_mode<synchronous>, transform_indices = @transform_8, window_bounds = array<i64: 1, 128>}, {pipeline_mode = #tpu.pipeline_mode<synchronous>, transform_indices = @transform_9, window_bounds = array<i64: 1, 128>}, {transform_indices = @transform_10, window_bounds = array<i64: 1, 32, 128>}]} {
    %c0 = arith.constant 0 : index
    %c0_0 = arith.constant 0 : index
    %c0_1 = arith.constant 0 : index
    %0 = vector.load %arg1[%c0, %c0_0, %c0_1] : memref<1x32x128xf32, #tpu.memory_space<vmem>>, vector<1x32x128xf32>
    %1 = vector.shape_cast %0 : vector<1x32x128xf32> to vector<32x128xf32>
    %2 = tpu.iota {dimensions = array<i32: 1>} : vector<1x32x128xi32>
    %3 = vector.shape_cast %2 : vector<1x32x128xi32> to vector<32x128xi32>
    %c0_2 = arith.constant 0 : index
    %c0_3 = arith.constant 0 : index
    %4 = vector.load %arg2[%c0_2, %c0_3] : memref<1x128xf32, #tpu.memory_space<vmem>>, vector<1x128xf32>
    %5 = vector.broadcast %4 : vector<1x128xf32> to vector<32x128xf32>
    %6 = arith.mulf %1, %5 : vector<32x128xf32>
    %c0_4 = arith.constant 0 : index
    %c0_5 = arith.constant 0 : index
    %7 = vector.load %arg3[%c0_4, %c0_5] : memref<1x128xf32, #tpu.memory_space<vmem>>, vector<1x128xf32>
    %8 = vector.broadcast %7 : vector<1x128xf32> to vector<32x128xf32>
    %9 = arith.addf %6, %8 : vector<32x128xf32>
    %c0_6 = arith.constant 0 : index
    %c0_7 = arith.constant 0 : index
    %10 = vector.load %arg4[%c0_6, %c0_7] : memref<128x512xf32, #tpu.memory_space<vmem>>, vector<128x512xf32>
    %cst = arith.constant dense<0.000000e+00> : vector<32x512xf32>
    %11 = tpu.matmul %9, %10, %cst {dimension_numbers = #tpu.dot_dimension_numbers<[1], [0], [0], [1], [0, 0, 1, 1], [], []>} : vector<32x128xf32>, vector<128x512xf32>, vector<32x512xf32> -> vector<32x512xf32>
    %12 = vector.extract_strided_slice %11 {offsets = [0, 0], sizes = [32, 128], strides = [1, 1]} : vector<32x512xf32> to vector<32x128xf32>
    %13 = vector.extract_strided_slice %11 {offsets = [0, 128], sizes = [32, 128], strides = [1, 1]} : vector<32x512xf32> to vector<32x128xf32>
    %c2_i32 = arith.constant 2 : i32
    %14 = tpu.dynamic_rotate %13 by %c2_i32 dim 0 : vector<32x128xf32>, i32 -> vector<32x128xf32>
    %c2_i32_8 = arith.constant 2 : i32
    %15 = vector.broadcast %c2_i32_8 : i32 to vector<32x128xi32>
    %16 = arith.cmpi sge, %3, %15 : vector<32x128xi32>
    %cst_9 = arith.constant 0.000000e+00 : f32
    %17 = vector.broadcast %cst_9 : f32 to vector<32x128xf32>
    %18 = arith.select %16, %14, %17 : vector<32x128xi1>, vector<32x128xf32>
    %19 = arith.addf %12, %18 : vector<32x128xf32>
    %20 = vector.extract_strided_slice %11 {offsets = [0, 256], sizes = [32, 128], strides = [1, 1]} : vector<32x512xf32> to vector<32x128xf32>
    %c4_i32 = arith.constant 4 : i32
    %21 = tpu.dynamic_rotate %20 by %c4_i32 dim 0 : vector<32x128xf32>, i32 -> vector<32x128xf32>
    %c4_i32_10 = arith.constant 4 : i32
    %22 = vector.broadcast %c4_i32_10 : i32 to vector<32x128xi32>
    %23 = arith.cmpi sge, %3, %22 : vector<32x128xi32>
    %cst_11 = arith.constant 0.000000e+00 : f32
    %24 = vector.broadcast %cst_11 : f32 to vector<32x128xf32>
    %25 = arith.select %23, %21, %24 : vector<32x128xi1>, vector<32x128xf32>
    %26 = arith.addf %19, %25 : vector<32x128xf32>
    %c0_12 = arith.constant 0 : index
    %c0_13 = arith.constant 0 : index
    %27 = vector.load %arg5[%c0_12, %c0_13] : memref<1x128xf32, #tpu.memory_space<vmem>>, vector<1x128xf32>
    %28 = vector.broadcast %27 : vector<1x128xf32> to vector<32x128xf32>
    %29 = arith.addf %26, %28 : vector<32x128xf32>
    %30 = vector.extract_strided_slice %11 {offsets = [0, 384], sizes = [32, 128], strides = [1, 1]} : vector<32x512xf32> to vector<32x128xf32>
    %cst_14 = arith.constant 0.000000e+00 : f32
    %31 = vector.broadcast %cst_14 : f32 to vector<32x128xf32>
    %32 = arith.maximumf %29, %31 : vector<32x128xf32>
    %c0_15 = arith.constant 0 : index
    %c0_16 = arith.constant 0 : index
    %33 = vector.load %arg6[%c0_15, %c0_16] : memref<1x128xf32, #tpu.memory_space<vmem>>, vector<1x128xf32>
    %34 = vector.broadcast %33 : vector<1x128xf32> to vector<32x128xf32>
    %35 = arith.mulf %32, %34 : vector<32x128xf32>
    %c0_17 = arith.constant 0 : index
    %c0_18 = arith.constant 0 : index
    %36 = vector.load %arg7[%c0_17, %c0_18] : memref<1x128xf32, #tpu.memory_space<vmem>>, vector<1x128xf32>
    %37 = vector.broadcast %36 : vector<1x128xf32> to vector<32x128xf32>
    %38 = arith.addf %35, %37 : vector<32x128xf32>
    %c0_19 = arith.constant 0 : index
    %c0_20 = arith.constant 0 : index
    %39 = vector.load %arg8[%c0_19, %c0_20] : memref<128x384xf32, #tpu.memory_space<vmem>>, vector<128x384xf32>
    %cst_21 = arith.constant dense<0.000000e+00> : vector<32x384xf32>
    %40 = tpu.matmul %38, %39, %cst_21 {dimension_numbers = #tpu.dot_dimension_numbers<[1], [0], [0], [1], [0, 0, 1, 1], [], []>} : vector<32x128xf32>, vector<128x384xf32>, vector<32x384xf32> -> vector<32x384xf32>
    %41 = vector.extract_strided_slice %40 {offsets = [0, 0], sizes = [32, 128], strides = [1, 1]} : vector<32x384xf32> to vector<32x128xf32>
    %42 = vector.extract_strided_slice %40 {offsets = [0, 128], sizes = [32, 128], strides = [1, 1]} : vector<32x384xf32> to vector<32x128xf32>
    %c2_i32_22 = arith.constant 2 : i32
    %43 = tpu.dynamic_rotate %42 by %c2_i32_22 dim 0 : vector<32x128xf32>, i32 -> vector<32x128xf32>
    %c2_i32_23 = arith.constant 2 : i32
    %44 = vector.broadcast %c2_i32_23 : i32 to vector<32x128xi32>
    %45 = arith.cmpi sge, %3, %44 : vector<32x128xi32>
    %cst_24 = arith.constant 0.000000e+00 : f32
    %46 = vector.broadcast %cst_24 : f32 to vector<32x128xf32>
    %47 = arith.select %45, %43, %46 : vector<32x128xi1>, vector<32x128xf32>
    %48 = arith.addf %41, %47 : vector<32x128xf32>
    %49 = vector.extract_strided_slice %40 {offsets = [0, 256], sizes = [32, 128], strides = [1, 1]} : vector<32x384xf32> to vector<32x128xf32>
    %c4_i32_25 = arith.constant 4 : i32
    %50 = tpu.dynamic_rotate %49 by %c4_i32_25 dim 0 : vector<32x128xf32>, i32 -> vector<32x128xf32>
    %c4_i32_26 = arith.constant 4 : i32
    %51 = vector.broadcast %c4_i32_26 : i32 to vector<32x128xi32>
    %52 = arith.cmpi sge, %3, %51 : vector<32x128xi32>
    %cst_27 = arith.constant 0.000000e+00 : f32
    %53 = vector.broadcast %cst_27 : f32 to vector<32x128xf32>
    %54 = arith.select %52, %50, %53 : vector<32x128xi1>, vector<32x128xf32>
    %55 = arith.addf %48, %54 : vector<32x128xf32>
    %c0_28 = arith.constant 0 : index
    %c0_29 = arith.constant 0 : index
    %56 = vector.load %arg9[%c0_28, %c0_29] : memref<1x128xf32, #tpu.memory_space<vmem>>, vector<1x128xf32>
    %57 = vector.broadcast %56 : vector<1x128xf32> to vector<32x128xf32>
    %58 = arith.addf %55, %57 : vector<32x128xf32>
    %cst_30 = arith.constant 0.000000e+00 : f32
    %59 = vector.broadcast %cst_30 : f32 to vector<32x128xf32>
    %60 = arith.maximumf %58, %59 : vector<32x128xf32>
    %c0_31 = arith.constant 0 : index
    %c0_32 = arith.constant 0 : index
    %61 = vector.load %arg10[%c0_31, %c0_32] : memref<1x128xf32, #tpu.memory_space<vmem>>, vector<1x128xf32>
    %62 = vector.broadcast %61 : vector<1x128xf32> to vector<32x128xf32>
    %63 = arith.addf %30, %62 : vector<32x128xf32>
    %64 = arith.addf %60, %63 : vector<32x128xf32>
    %cst_33 = arith.constant 0.000000e+00 : f32
    %65 = vector.broadcast %cst_33 : f32 to vector<32x128xf32>
    %66 = arith.maximumf %64, %65 : vector<32x128xf32>
    %67 = vector.shape_cast %66 : vector<32x128xf32> to vector<1x32x128xf32>
    %c0_34 = arith.constant 0 : index
    %c0_35 = arith.constant 0 : index
    %c0_36 = arith.constant 0 : index
    %68 = vector.load %arg11[%c0_34, %c0_35, %c0_36] : memref<1x32x128xf32, #tpu.memory_space<vmem>>, vector<1x32x128xf32>
    tpu.vector_store %arg11[%c0_34, %c0_35, %c0_36], %67 {strides = array<i32>} : memref<1x32x128xf32, #tpu.memory_space<vmem>>, vector<1x32x128xf32>,
    return
  }
  func.func @transform_0(%arg0: i32) -> (i32, i32, i32) {
    %c0_i32 = arith.constant 0 : i32
    %c0_i32_0 = arith.constant 0 : i32
    %c0_i32_1 = arith.constant 0 : i32
    return %arg0, %c0_i32, %c0_i32_0 : i32, i32, i32
  }
  func.func @transform_1(%arg0: i32) -> (i32, i32) {
    %c0_i32 = arith.constant 0 : i32
    %c0_i32_0 = arith.constant 0 : i32
    %c0_i32_1 = arith.constant 0 : i32
    return %c0_i32, %c0_i32_0 : i32, i32
  }
  func.func @transform_2(%arg0: i32) -> (i32, i32) {
    %c0_i32 = arith.constant 0 : i32
    %c0_i32_0 = arith.constant 0 : i32
    %c0_i32_1 = arith.constant 0 : i32
    return %c0_i32, %c0_i32_0 : i32, i32
  }
  func.func @transform_3(%arg0: i32) -> (i32, i32) {
    %c0_i32 = arith.constant 0 : i32
    %c0_i32_0 = arith.constant 0 : i32
    %c0_i32_1 = arith.constant 0 : i32
    return %c0_i32, %c0_i32_0 : i32, i32
  }
  func.func @transform_4(%arg0: i32) -> (i32, i32) {
    %c0_i32 = arith.constant 0 : i32
    %c0_i32_0 = arith.constant 0 : i32
    %c0_i32_1 = arith.constant 0 : i32
    return %c0_i32, %c0_i32_0 : i32, i32
  }
  func.func @transform_5(%arg0: i32) -> (i32, i32) {
    %c0_i32 = arith.constant 0 : i32
    %c0_i32_0 = arith.constant 0 : i32
    %c0_i32_1 = arith.constant 0 : i32
    return %c0_i32, %c0_i32_0 : i32, i32
  }
  func.func @transform_6(%arg0: i32) -> (i32, i32) {
    %c0_i32 = arith.constant 0 : i32
    %c0_i32_0 = arith.constant 0 : i32
    %c0_i32_1 = arith.constant 0 : i32
    return %c0_i32, %c0_i32_0 : i32, i32
  }
  func.func @transform_7(%arg0: i32) -> (i32, i32) {
    %c0_i32 = arith.constant 0 : i32
    %c0_i32_0 = arith.constant 0 : i32
    %c0_i32_1 = arith.constant 0 : i32
    return %c0_i32, %c0_i32_0 : i32, i32
  }
  func.func @transform_8(%arg0: i32) -> (i32, i32) {
    %c0_i32 = arith.constant 0 : i32
    %c0_i32_0 = arith.constant 0 : i32
    %c0_i32_1 = arith.constant 0 : i32
    return %c0_i32, %c0_i32_0 : i32, i32
  }
  func.func @transform_9(%arg0: i32) -> (i32, i32) {
    %c0_i32 = arith.constant 0 : i32
    %c0_i32_0 = arith.constant 0 : i32
    %c0_i32_1 = arith.constant 0 : i32
    return %c0_i32, %c0_i32_0 : i32, i32
  }
  func.func @transform_10(%arg0: i32) -> (i32, i32, i32) {
    %c0_i32 = arith.constant 0 : i32
    %c0_i32_0 = arith.constant 0 : i32
    %c0_i32_1 = arith.constant 0 : i32
    return %arg0, %c0_i32, %c0_i32_0 : i32, i32, i32
  }
}

</mosaic_0001>

<llo_original>
// kernel: tpu_custom_call.1
$region0: #{tpu_custom_call.1}
  #allocation0 [shape = 'u32[]', space=smem, size = 0x4, offset = 0x4, fixed_abs, tag = 'smem constant byte address 0x4 - core index']
  #allocation1 [shape = 'u32[144,128]{1,0:T(1,128)}', space=vmem, size = 0x12000, scoped, tag = 'internal scratch']
  %s0 = inlined_call_operand.hbm [shape: f32[2,32,128], index: 0, kind: input, shape index: {}]
  %s1 = inlined_call_operand.vmem [shape: f32[1,128], index: 1, kind: input, shape index: {}]
  %s2 = inlined_call_operand.vmem [shape: f32[1,128], index: 2, kind: input, shape index: {}]
  %s3 = inlined_call_operand.hbm [shape: f32[128,512], index: 3, kind: input, shape index: {}]
  %s4 = inlined_call_operand.vmem [shape: f32[1,128], index: 4, kind: input, shape index: {}]
  %s5 = inlined_call_operand.vmem [shape: f32[1,128], index: 5, kind: input, shape index: {}]
  %s6 = inlined_call_operand.vmem [shape: f32[1,128], index: 6, kind: input, shape index: {}]
  %s7 = inlined_call_operand.hbm [shape: f32[128,384], index: 7, kind: input, shape index: {}]
  %s8 = inlined_call_operand.vmem [shape: f32[1,128], index: 8, kind: input, shape index: {}]
  %s9 = inlined_call_operand.vmem [shape: f32[1,128], index: 9, kind: input, shape index: {}]
  %s10 = inlined_call_operand.hbm [shape: f32[2,32,128], index: 10, kind: output, shape index: {}]
  %s11 = sld [smem:[#allocation0]]
  $region85: #{tpu_custom_call.1} parent=0
    _
  %s13 = ssub.s32 1, %s11
  %s14 = scalar_select 0, %s13, %s11
  $region1: #{tpu_custom_call.1} parent=0
    #allocation2 [shape = 'u8[32768]{0}', space=vmem, size = 0x8000, scoped, tag = 'input window, operand 0']
    #allocation3 [shape = 's32[2]{0}', space=sflag, size = 0x8, scoped, tag = 'scoped memory for tpu_custom_call.1']
    #allocation4 [shape = 's32[2]{0}', space=sflag, size = 0x8, scoped, tag = 'scoped memory for tpu_custom_call.1']
    #allocation5 [shape = 'u8[262144]{0}', space=vmem, size = 0x40000, scoped, tag = 'input window, operand 3, single buffered']
    #allocation6 [shape = 's32[1]{0}', space=sflag, size = 0x4, scoped, tag = 'scoped memory for tpu_custom_call.1']
    #allocation7 [shape = 'u8[196608]{0}', space=vmem, size = 0x30000, scoped, tag = 'input window, operand 7, single buffered']
    #allocation8 [shape = 'u8[32768]{0}', space=vmem, size = 0x8000, scoped, tag = 'output window, operand 0']
    %15 = vsyncpa [#allocation3], 0
    %s16 = scalar_lea.sflag [#allocation3], 1
    %17 = vsyncpa %s16, 0
    %18 = vsyncpa [#allocation6], 0
    %19 = vsyncpa [#allocation4], 0
    %s20 = scalar_lea.sflag [#allocation4], 1
    %21 = vsyncpa %s20, 0
    loop: start=0, step=1, limit=4
    $region2: #{tpu_custom_call.1} parent=1 // loop_pre_header
      _
    $region3: #{tpu_custom_call.1} parent=1 // loop_header
      %s23 = sphi 0, %s27
      %p24 = scmp.ge.s32.totalorder %s23, 4
      %s33 = sphi 0, %s35
      %s36 = sphi 0, %s33
      %s37 = sphi 0, %s36
      %s53 = sphi 0, %s37
      %s57 = sphi 0, %s57
      %s59 = sphi 0, %s57
      %s60 = sphi 0, %s59
      %s74 = sphi 0, %s60
      %s78 = sphi 0, %s78
      %s80 = sphi 0, %s78
      %s81 = sphi 0, %s80
      %s95 = sphi 0, %s81
      %s99 = sphi 0, %s99
      %s101 = sphi 0, %s99
      %s102 = sphi 0, %s101
      %s116 = sphi 0, %s102
      %s120 = sphi 0, %s120
      %s122 = sphi 0, %s120
      %s123 = sphi 0, %s122
      %s137 = sphi 0, %s123
      %s141 = sphi 0, %s141
      %s143 = sphi 0, %s141
      %s144 = sphi 0, %s143
      %s158 = sphi 0, %s144
      %s162 = sphi 0, %s162
      %s164 = sphi 0, %s162
      %s165 = sphi 0, %s164
      %s179 = sphi 0, %s165
      %s183 = sphi 0, %s183
      %s185 = sphi 0, %s183
      %s186 = sphi 0, %s185
      %s200 = sphi 0, %s186
      %s204 = sphi 0, %s204
      %s206 = sphi 0, %s204
      %s207 = sphi 0, %s206
      %s221 = sphi 0, %s207
      %s225 = sphi 0, %s225
      %s227 = sphi 0, %s225
      %s228 = sphi 0, %s227
      %s242 = sphi 0, %s228
      %s248 = sphi 0, %s250
      %s251 = sphi 0, %s248
      %s252 = sphi 0, %s251
      %s268 = sphi 0, %s252
    $region4: #{tpu_custom_call.1} parent=1 // loop_header_branch
      %26 = sbr.rel (%p24) target = $region8
    $region5: #{tpu_custom_call.1} parent=1 // loop_body
      %s28 = ssub.s32 %s23, 1
      %s29 = ssub.s32 %s23, 2
      %s30 = sadd.s32 %s23, 1
      %s31 = ssub.s32 %s23, %s30
      %p32 = scmp.eq.s32.totalorder %s31, 0
      %s34 = sadd.s32 %s33, 1
      %s35 = scalar_select %p32, %s33, %s34
      %p38 = pneg %p32
      %p39 = scmp.eq.s32.totalorder %s23, 1
      %p40 = por %p38, %p39
      %p41 = scmp.ne.s32.totalorder %s33, %s36
      %p42 = scmp.eq.s32.totalorder %s23, 0
      %p43 = por %p41, %p42
      %p44 = scmp.ne.s32.totalorder %s33, %s36
      %p45 = scmp.eq.s32.totalorder %s28, 1
      %p46 = por %p44, %p45
      %p47 = scmp.ne.s32.totalorder %s36, %s37
      %p48 = scmp.eq.s32.totalorder %s28, 0
      %p49 = por %p47, %p48
      %p50 = scmp.ne.s32.totalorder %s36, %s37
      %p51 = scmp.eq.s32.totalorder %s29, 1
      %p52 = por %p50, %p51
      %p54 = scmp.ne.s32.totalorder %s37, %s53
      %p55 = scmp.eq.s32.totalorder %s29, 0
      %p56 = por %p54, %p55
      %s58 = sadd.s32 %s57, 1
      %p61 = scmp.eq.s32.totalorder %s23, 1
      %p62 = scmp.ne.s32.totalorder %s57, %s59
      %p63 = scmp.eq.s32.totalorder %s23, 0
      %p64 = por %p62, %p63
      %p65 = scmp.ne.s32.totalorder %s57, %s59
      %p66 = scmp.eq.s32.totalorder %s28, 1
      %p67 = por %p65, %p66
      %p68 = scmp.ne.s32.totalorder %s59, %s60
      %p69 = scmp.eq.s32.totalorder %s28, 0
      %p70 = por %p68, %p69
      %p71 = scmp.ne.s32.totalorder %s59, %s60
      %p72 = scmp.eq.s32.totalorder %s29, 1
      %p73 = por %p71, %p72
      %p75 = scmp.ne.s32.totalorder %s60, %s74
      %p76 = scmp.eq.s32.totalorder %s29, 0
      %p77 = por %p75, %p76
      %s79 = sadd.s32 %s78, 1
      %p82 = scmp.eq.s32.totalorder %s23, 1
      %p83 = scmp.ne.s32.totalorder %s78, %s80
      %p84 = scmp.eq.s32.totalorder %s23, 0
      %p85 = por %p83, %p84
      %p86 = scmp.ne.s32.totalorder %s78, %s80
      %p87 = scmp.eq.s32.totalorder %s28, 1
      %p88 = por %p86, %p87
      %p89 = scmp.ne.s32.totalorder %s80, %s81
      %p90 = scmp.eq.s32.totalorder %s28, 0
      %p91 = por %p89, %p90
      %p92 = scmp.ne.s32.totalorder %s80, %s81
      %p93 = scmp.eq.s32.totalorder %s29, 1
      %p94 = por %p92, %p93
      %p96 = scmp.ne.s32.totalorder %s81, %s95
      %p97 = scmp.eq.s32.totalorder %s29, 0
      %p98 = por %p96, %p97
      %s100 = sadd.s32 %s99, 1
      %p103 = scmp.eq.s32.totalorder %s23, 1
      %p104 = scmp.ne.s32.totalorder %s99, %s101
      %p105 = scmp.eq.s32.totalorder %s23, 0
      %p106 = por %p104, %p105
      %p107 = scmp.ne.s32.totalorder %s99, %s101
      %p108 = scmp.eq.s32.totalorder %s28, 1
      %p109 = por %p107, %p108
      %p110 = scmp.ne.s32.totalorder %s101, %s102
      %p111 = scmp.eq.s32.totalorder %s28, 0
      %p112 = por %p110, %p111
      %p113 = scmp.ne.s32.totalorder %s101, %s102
      %p114 = scmp.eq.s32.totalorder %s29, 1
      %p115 = por %p113, %p114
      %p117 = scmp.ne.s32.totalorder %s102, %s116
      %p118 = scmp.eq.s32.totalorder %s29, 0
      %p119 = por %p117, %p118
      %s121 = sadd.s32 %s120, 1
      %p124 = scmp.eq.s32.totalorder %s23, 1
      %p125 = scmp.ne.s32.totalorder %s120, %s122
      %p126 = scmp.eq.s32.totalorder %s23, 0
      %p127 = por %p125, %p126
      %p128 = scmp.ne.s32.totalorder %s120, %s122
      %p129 = scmp.eq.s32.totalorder %s28, 1
      %p130 = por %p128, %p129
      %p131 = scmp.ne.s32.totalorder %s122, %s123
      %p132 = scmp.eq.s32.totalorder %s28, 0
      %p133 = por %p131, %p132
      %p134 = scmp.ne.s32.totalorder %s122, %s123
      %p135 = scmp.eq.s32.totalorder %s29, 1
      %p136 = por %p134, %p135
      %p138 = scmp.ne.s32.totalorder %s123, %s137
      %p139 = scmp.eq.s32.totalorder %s29, 0
      %p140 = por %p138, %p139
      %s142 = sadd.s32 %s141, 1
      %p145 = scmp.eq.s32.totalorder %s23, 1
      %p146 = scmp.ne.s32.totalorder %s141, %s143
      %p147 = scmp.eq.s32.totalorder %s23, 0
      %p148 = por %p146, %p147
      %p149 = scmp.ne.s32.totalorder %s141, %s143
      %p150 = scmp.eq.s32.totalorder %s28, 1
      %p151 = por %p149, %p150
      %p152 = scmp.ne.s32.totalorder %s143, %s144
      %p153 = scmp.eq.s32.totalorder %s28, 0
      %p154 = por %p152, %p153
      %p155 = scmp.ne.s32.totalorder %s143, %s144
      %p156 = scmp.eq.s32.totalorder %s29, 1
      %p157 = por %p155, %p156
      %p159 = scmp.ne.s32.totalorder %s144, %s158
      %p160 = scmp.eq.s32.totalorder %s29, 0
      %p161 = por %p159, %p160
      %s163 = sadd.s32 %s162, 1
      %p166 = scmp.eq.s32.totalorder %s23, 1
      %p167 = scmp.ne.s32.totalorder %s162, %s164
      %p168 = scmp.eq.s32.totalorder %s23, 0
      %p169 = por %p167, %p168
      %p170 = scmp.ne.s32.totalorder %s162, %s164
      %p171 = scmp.eq.s32.totalorder %s28, 1
      %p172 = por %p170, %p171
      %p173 = scmp.ne.s32.totalorder %s164, %s165
      %p174 = scmp.eq.s32.totalorder %s28, 0
      %p175 = por %p173, %p174
      %p176 = scmp.ne.s32.totalorder %s164, %s165
      %p177 = scmp.eq.s32.totalorder %s29, 1
      %p178 = por %p176, %p177
      %p180 = scmp.ne.s32.totalorder %s165, %s179
      %p181 = scmp.eq.s32.totalorder %s29, 0
      %p182 = por %p180, %p181
      %s184 = sadd.s32 %s183, 1
      %p187 = scmp.eq.s32.totalorder %s23, 1
      %p188 = scmp.ne.s32.totalorder %s183, %s185
      %p189 = scmp.eq.s32.totalorder %s23, 0
      %p190 = por %p188, %p189
      %p191 = scmp.ne.s32.totalorder %s183, %s185
      %p192 = scmp.eq.s32.totalorder %s28, 1
      %p193 = por %p191, %p192
      %p194 = scmp.ne.s32.totalorder %s185, %s186
      %p195 = scmp.eq.s32.totalorder %s28, 0
      %p196 = por %p194, %p195
      %p197 = scmp.ne.s32.totalorder %s185, %s186
      %p198 = scmp.eq.s32.totalorder %s29, 1
      %p199 = por %p197, %p198
      %p201 = scmp.ne.s32.totalorder %s186, %s200
      %p202 = scmp.eq.s32.totalorder %s29, 0
      %p203 = por %p201, %p202
      %s205 = sadd.s32 %s204, 1
      %p208 = scmp.eq.s32.totalorder %s23, 1
      %p209 = scmp.ne.s32.totalorder %s204, %s206
      %p210 = scmp.eq.s32.totalorder %s23, 0
      %p211 = por %p209, %p210
      %p212 = scmp.ne.s32.totalorder %s204, %s206
      %p213 = scmp.eq.s32.totalorder %s28, 1
      %p214 = por %p212, %p213
      %p215 = scmp.ne.s32.totalorder %s206, %s207
      %p216 = scmp.eq.s32.totalorder %s28, 0
      %p217 = por %p215, %p216
      %p218 = scmp.ne.s32.totalorder %s206, %s207
      %p219 = scmp.eq.s32.totalorder %s29, 1
      %p220 = por %p218, %p219
      %p222 = scmp.ne.s32.totalorder %s207, %s221
      %p223 = scmp.eq.s32.totalorder %s29, 0
      %p224 = por %p222, %p223
      %s226 = sadd.s32 %s225, 1
      %p229 = scmp.eq.s32.totalorder %s23, 1
      %p230 = scmp.ne.s32.totalorder %s225, %s227
      %p231 = scmp.eq.s32.totalorder %s23, 0
      %p232 = por %p230, %p231
      %p233 = scmp.ne.s32.totalorder %s225, %s227
      %p234 = scmp.eq.s32.totalorder %s28, 1
      %p235 = por %p233, %p234
      %p236 = scmp.ne.s32.totalorder %s227, %s228
      %p237 = scmp.eq.s32.totalorder %s28, 0
      %p238 = por %p236, %p237
      %p239 = scmp.ne.s32.totalorder %s227, %s228
      %p240 = scmp.eq.s32.totalorder %s29, 1
      %p241 = por %p239, %p240
      %p243 = scmp.ne.s32.totalorder %s228, %s242
      %p244 = scmp.eq.s32.totalorder %s29, 0
      %p245 = por %p243, %p244
      %s246 = ssub.s32 %s23, %s30
      %p247 = scmp.eq.s32.totalorder %s246, 0
      %s249 = sadd.s32 %s248, 1
      %s250 = scalar_select %p247, %s248, %s249
      %p253 = pneg %p247
      %p254 = scmp.eq.s32.totalorder %s23, 1
      %p255 = por %p253, %p254
      %p256 = scmp.ne.s32.totalorder %s248, %s251
      %p257 = scmp.eq.s32.totalorder %s23, 0
      %p258 = por %p256, %p257
      %p259 = scmp.ne.s32.totalorder %s248, %s251
      %p260 = scmp.eq.s32.totalorder %s28, 1
      %p261 = por %p259, %p260
      %p262 = scmp.ne.s32.totalorder %s251, %s252
      %p263 = scmp.eq.s32.totalorder %s28, 0
      %p264 = por %p262, %p263
      %p265 = scmp.ne.s32.totalorder %s251, %s252
      %p266 = scmp.eq.s32.totalorder %s29, 1
      %p267 = por %p265, %p266
      %p269 = scmp.ne.s32.totalorder %s252, %s268
      %p270 = scmp.eq.s32.totalorder %s29, 0
      %p271 = por %p269, %p270
      %p272 = scmp.le.s32.totalorder 1, %s23
      %p273 = scmp.lt.s32.totalorder %s23, 3
      %p274 = pnand %p272, %p273
      %p275 = pneg %p274
      // Predicated region
      $region9: #{tpu_custom_call.1} parent=5 // pred_check
        _
      $region10: #{tpu_custom_call.1} parent=5 // pred_check_branch
        %277 = sbr.rel (%p274) target = $region12
      $region11: #{tpu_custom_call.1} parent=5 // pred_region
        %s278 = ssub.s32 %s23, 1
        // Predicated region
        $region13: #{tpu_custom_call.1} parent=11 // pred_check
          %p279 = pneg %p70
        $region14: #{tpu_custom_call.1} parent=11 // pred_check_branch
          %281 = sbr.rel (%p279) target = $region16
        $region15: #{tpu_custom_call.1} parent=11 // pred_region
          _
        $region16: #{tpu_custom_call.1} parent=11 // pred_fallthru
          _
        // Predicated region
        $region17: #{tpu_custom_call.1} parent=11 // pred_check
          %p282 = pneg %p91
        $region18: #{tpu_custom_call.1} parent=11 // pred_check_branch
          %284 = sbr.rel (%p282) target = $region20
        $region19: #{tpu_custom_call.1} parent=11 // pred_region
          _
        $region20: #{tpu_custom_call.1} parent=11 // pred_fallthru
          _
        // Predicated region
        $region21: #{tpu_custom_call.1} parent=11 // pred_check
          %p285 = pneg %p112
        $region22: #{tpu_custom_call.1} parent=11 // pred_check_branch
          %287 = sbr.rel (%p285) target = $region24
        $region23: #{tpu_custom_call.1} parent=11 // pred_region
          %s289 = ssub.s32 8192, 8192
          %290 = vsyncadd [#allocation6], %s289
          %s291 = sshll.u32 [#allocation5], 4
          %s292 = int_to_ptr.vmem [resolvable:$true] %s291
          %297 = dma.hbm_to_vmem [thread:$0]  %s3, 8192, %s292, [#allocation6], 512, 512, 32
        $region24: #{tpu_custom_call.1} parent=11 // pred_fallthru
          _
        // Predicated region
        $region25: #{tpu_custom_call.1} parent=11 // pred_check
          %p298 = pneg %p133
        $region26: #{tpu_custom_call.1} parent=11 // pred_check_branch
          %300 = sbr.rel (%p298) target = $region28
        $region27: #{tpu_custom_call.1} parent=11 // pred_region
          _
        $region28: #{tpu_custom_call.1} parent=11 // pred_fallthru
          _
        // Predicated region
        $region29: #{tpu_custom_call.1} parent=11 // pred_check
          %p301 = pneg %p154
        $region30: #{tpu_custom_call.1} parent=11 // pred_check_branch
          %303 = sbr.rel (%p301) target = $region32
        $region31: #{tpu_custom_call.1} parent=11 // pred_region
          _
        $region32: #{tpu_custom_call.1} parent=11 // pred_fallthru
          _
        // Predicated region
        $region33: #{tpu_custom_call.1} parent=11 // pred_check
          %p304 = pneg %p175
        $region34: #{tpu_custom_call.1} parent=11 // pred_check_branch
          %306 = sbr.rel (%p304) target = $region36
        $region35: #{tpu_custom_call.1} parent=11 // pred_region
          _
        $region36: #{tpu_custom_call.1} parent=11 // pred_fallthru
          _
        // Predicated region
        $region37: #{tpu_custom_call.1} parent=11 // pred_check
          %p307 = pneg %p196
        $region38: #{tpu_custom_call.1} parent=11 // pred_check_branch
          %309 = sbr.rel (%p307) target = $region40
        $region39: #{tpu_custom_call.1} parent=11 // pred_region
          %s311 = ssub.s32 6144, 6144
          %312 = vsyncadd [#allocation6], %s311
          %s313 = sshll.u32 [#allocation7], 4
          %s314 = int_to_ptr.vmem [resolvable:$true] %s313
          %319 = dma.hbm_to_vmem [thread:$0]  %s7, 6144, %s314, [#allocation6], 384, 384, 24
        $region40: #{tpu_custom_call.1} parent=11 // pred_fallthru
          _
        // Predicated region
        $region41: #{tpu_custom_call.1} parent=11 // pred_check
          %p320 = pneg %p217
        $region42: #{tpu_custom_call.1} parent=11 // pred_check_branch
          %322 = sbr.rel (%p320) target = $region44
        $region43: #{tpu_custom_call.1} parent=11 // pred_region
          _
        $region44: #{tpu_custom_call.1} parent=11 // pred_fallthru
          _
        // Predicated region
        $region45: #{tpu_custom_call.1} parent=11 // pred_check
          %p323 = pneg %p238
        $region46: #{tpu_custom_call.1} parent=11 // pred_check_branch
          %325 = sbr.rel (%p323) target = $region48
        $region47: #{tpu_custom_call.1} parent=11 // pred_region
          _
        $region48: #{tpu_custom_call.1} parent=11 // pred_fallthru
          _
      $region12: #{tpu_custom_call.1} parent=5 // pred_fallthru
        _
      %p326 = scmp.lt.s32.totalorder %s23, 2
      // Predicated region
      $region49: #{tpu_custom_call.1} parent=5 // pred_check
        %p327 = pneg %p326
      $region50: #{tpu_custom_call.1} parent=5 // pred_check_branch
        %329 = sbr.rel (%p327) target = $region52
      $region51: #{tpu_custom_call.1} parent=5 // pred_region
        // Predicated region
        $region53: #{tpu_custom_call.1} parent=51 // pred_check
          %p330 = pneg %p43
        $region54: #{tpu_custom_call.1} parent=51 // pred_check_branch
          %332 = sbr.rel (%p330) target = $region56
        $region55: #{tpu_custom_call.1} parent=51 // pred_region
          %s333 = sand.u32 %s33, 1
          %s334 = scalar_lea.sflag [#allocation3], %s333
          %s335 = sand.u32 %s33, 1
          %s336 = smul.addr %s335, 32
          %s337 = scalar_lea.vmem [#allocation2], %s336
          %s339 = ssub.s32 512, 512
          %340 = vsyncadd %s334, %s339
          %s341 = smul.addr %s23, 4
          %s342 = smul.addr %s341, 128
          %s343 = scalar_lea.hbm %s0, %s342
          %s344 = sshll.u32 %s337, 4
          %s345 = int_to_ptr.vmem [resolvable:$true] %s344
          %350 = dma.hbm_to_vmem [thread:$0]  %s343, 512, %s345, %s334, 128, 128, 8
        $region56: #{tpu_custom_call.1} parent=51 // pred_fallthru
          _
      $region52: #{tpu_custom_call.1} parent=5 // pred_fallthru
        _
      %p351 = scmp.le.s32.totalorder 1, %s23
      %p352 = scmp.lt.s32.totalorder %s23, 3
      %p353 = pnand %p351, %p352
      %p354 = pneg %p353
      // Predicated region
      $region57: #{tpu_custom_call.1} parent=5 // pred_check
        _
      $region58: #{tpu_custom_call.1} parent=5 // pred_check_branch
        %356 = sbr.rel (%p353) target = $region60
      $region59: #{tpu_custom_call.1} parent=5 // pred_region
        %s357 = ssub.s32 %s23, 1
        %s358 = sand.u32 %s36, 1
        %s359 = scalar_lea.sflag [#allocation3], %s358
        %s360 = sand.u32 %s36, 1
        %s361 = smul.addr %s360, 32
        %s362 = scalar_lea.vmem [#allocation2], %s361
        // Predicated region
        $region61: #{tpu_custom_call.1} parent=59 // pred_check
          %p363 = pneg %p49
        $region62: #{tpu_custom_call.1} parent=59 // pred_check_branch
          %365 = sbr.rel (%p363) target = $region64
        $region63: #{tpu_custom_call.1} parent=59 // pred_region
          %366 = dma.done %s359, 512
        $region64: #{tpu_custom_call.1} parent=59 // pred_fallthru
          _
        // Predicated region
        $region65: #{tpu_custom_call.1} parent=59 // pred_check
          %p367 = pneg %p112
        $region66: #{tpu_custom_call.1} parent=59 // pred_check_branch
          %369 = sbr.rel (%p367) target = $region68
        $region67: #{tpu_custom_call.1} parent=59 // pred_region
          %370 = dma.done [#allocation6], 8192
        $region68: #{tpu_custom_call.1} parent=59 // pred_fallthru
          _
        // Predicated region
        $region69: #{tpu_custom_call.1} parent=59 // pred_check
          %p371 = pneg %p196
        $region70: #{tpu_custom_call.1} parent=59 // pred_check_branch
          %373 = sbr.rel (%p371) target = $region72
        $region71: #{tpu_custom_call.1} parent=59 // pred_region
          %374 = dma.done [#allocation6], 6144
        $region72: #{tpu_custom_call.1} parent=59 // pred_fallthru
          _
        %s375 = sand.u32 %s36, 1
        %s376 = scalar_lea.sflag [#allocation3], %s375
        %s377 = sand.u32 %s36, 1
        %s378 = smul.addr %s377, 32
        %s379 = scalar_lea.vmem [#allocation2], %s378
        %p380 = pneg %p49
        %p381 = pneg %p46
        %p382 = pneg %p70
        %p383 = pneg %p67
        %p384 = pneg %p91
        %p385 = pneg %p88
        %p386 = pneg %p112
        %p387 = pneg %p109
        %p388 = pneg %p133
        %p389 = pneg %p130
        %p390 = pneg %p154
        %p391 = pneg %p151
        %p392 = pneg %p175
        %p393 = pneg %p172
        %p394 = pneg %p196
        %p395 = pneg %p193
        %p396 = pneg %p217
        %p397 = pneg %p214
        %p398 = pneg %p238
        %p399 = pneg %p235
        %p400 = pneg %p264
        %p401 = pneg %p261
        %s402 = sand.u32 %s251, 1
        %s403 = scalar_lea.sflag [#allocation4], %s402
        %s404 = sand.u32 %s251, 1
        %s405 = smul.addr %s404, 32
        %s406 = scalar_lea.vmem [#allocation8], %s405
        %v407 = vld [vmem:[%s362] sm:$0xff]
        %v408 = vld [vmem:[%s362 + $0x8] sm:$0xff]
        %v409 = vld [vmem:[%s362 + $0x10] sm:$0xff]
        %v410 = vld [vmem:[%s362 + $0x18] sm:$0xff]
        %v411 = vlaneseq
        %v412 = vshrl.u32 %v411, 7
        %v413 = vadd.s32 %v412, 8
        %v414 = vadd.s32 %v412, 16
        %v415 = vadd.s32 %v412, 24
        %v416 = vld [vmem:[%s1] sm:$0x1]
        %v418 = vlaneseq
        %v419 = vshrl.u32 %v418, 7
        %v420 = vsub.s32 0, %v419
        %v421 = vrot.slane %v416, %v420
        %v423 = vmul.f32 %v407, %v421
        %v424 = vmul.f32 %v408, %v421
        %v425 = vmul.f32 %v409, %v421
        %v426 = vmul.f32 %v410, %v421
        %v427 = vld [vmem:[%s2] sm:$0x1]
        %v429 = vlaneseq
        %v430 = vshrl.u32 %v429, 7
        %v431 = vsub.s32 0, %v430
        %v432 = vrot.slane %v427, %v431
        %v434 = vadd.f32 %v423, %v432
        %v435 = vadd.f32 %v424, %v432
        %v436 = vadd.f32 %v425, %v432
        %v437 = vadd.f32 %v426, %v432
        %v438 = vld [vmem:[#allocation5] sm:$0xff]
        %v439 = vld [vmem:[#allocation5 + $0x8] sm:$0xff]
        %v440 = vld [vmem:[#allocation5 + $0x10] sm:$0xff]
        %v441 = vld [vmem:[#allocation5 + $0x18] sm:$0xff]
        %v442 = vld [vmem:[#allocation5 + $0x20] sm:$0xff]
        %v443 = vld [vmem:[#allocation5 + $0x28] sm:$0xff]
        %v444 = vld [vmem:[#allocation5 + $0x30] sm:$0xff]
        %v445 = vld [vmem:[#allocation5 + $0x38] sm:$0xff]
        %v446 = vld [vmem:[#allocation5 + $0x40] sm:$0xff]
        %v447 = vld [vmem:[#allocation5 + $0x48] sm:$0xff]
        %v448 = vld [vmem:[#allocation5 + $0x50] sm:$0xff]
        %v449 = vld [vmem:[#allocation5 + $0x58] sm:$0xff]
        %v450 = vld [vmem:[#allocation5 + $0x60] sm:$0xff]
        %v451 = vld [vmem:[#allocation5 + $0x68] sm:$0xff]
        %v452 = vld [vmem:[#allocation5 + $0x70] sm:$0xff]
        %v453 = vld [vmem:[#allocation5 + $0x78] sm:$0xff]
        %v454 = vld [vmem:[#allocation5 + $0x80] sm:$0xff]
        %v455 = vld [vmem:[#allocation5 + $0x88] sm:$0xff]
        %v456 = vld [vmem:[#allocation5 + $0x90] sm:$0xff]
        %v457 = vld [vmem:[#allocation5 + $0x98] sm:$0xff]
        %v458 = vld [vmem:[#allocation5 + $0xa0] sm:$0xff]
        %v459 = vld [vmem:[#allocation5 + $0xa8] sm:$0xff]
        %v460 = vld [vmem:[#allocation5 + $0xb0] sm:$0xff]
        %v461 = vld [vmem:[#allocation5 + $0xb8] sm:$0xff]
        %v462 = vld [vmem:[#allocation5 + $0xc0] sm:$0xff]
        %v463 = vld [vmem:[#allocation5 + $0xc8] sm:$0xff]
        %v464 = vld [vmem:[#allocation5 + $0xd0] sm:$0xff]
        %v465 = vld [vmem:[#allocation5 + $0xd8] sm:$0xff]
        %v466 = vld [vmem:[#allocation5 + $0xe0] sm:$0xff]
        %v467 = vld [vmem:[#allocation5 + $0xe8] sm:$0xff]
        %v468 = vld [vmem:[#allocation5 + $0xf0] sm:$0xff]
        %v469 = vld [vmem:[#allocation5 + $0xf8] sm:$0xff]
        %v470 = vld [vmem:[#allocation5 + $0x100] sm:$0xff]
        %v471 = vld [vmem:[#allocation5 + $0x108] sm:$0xff]
        %v472 = vld [vmem:[#allocation5 + $0x110] sm:$0xff]
        %v473 = vld [vmem:[#allocation5 + $0x118] sm:$0xff]
        %v474 = vld [vmem:[#allocation5 + $0x120] sm:$0xff]
        %v475 = vld [vmem:[#allocation5 + $0x128] sm:$0xff]
        %v476 = vld [vmem:[#allocation5 + $0x130] sm:$0xff]
        %v477 = vld [vmem:[#allocation5 + $0x138] sm:$0xff]
        %v478 = vld [vmem:[#allocation5 + $0x140] sm:$0xff]
        %v479 = vld [vmem:[#allocation5 + $0x148] sm:$0xff]
        %v480 = vld [vmem:[#allocation5 + $0x150] sm:$0xff]
        %v481 = vld [vmem:[#allocation5 + $0x158] sm:$0xff]
        %v482 = vld [vmem:[#allocation5 + $0x160] sm:$0xff]
        %v483 = vld [vmem:[#allocation5 + $0x168] sm:$0xff]
        %v484 = vld [vmem:[#allocation5 + $0x170] sm:$0xff]
        %v485 = vld [vmem:[#allocation5 + $0x178] sm:$0xff]
        %v486 = vld [vmem:[#allocation5 + $0x180] sm:$0xff]
        %v487 = vld [vmem:[#allocation5 + $0x188] sm:$0xff]
        %v488 = vld [vmem:[#allocation5 + $0x190] sm:$0xff]
        %v489 = vld [vmem:[#allocation5 + $0x198] sm:$0xff]
        %v490 = vld [vmem:[#allocation5 + $0x1a0] sm:$0xff]
        %v491 = vld [vmem:[#allocation5 + $0x1a8] sm:$0xff]
        %v492 = vld [vmem:[#allocation5 + $0x1b0] sm:$0xff]
        %v493 = vld [vmem:[#allocation5 + $0x1b8] sm:$0xff]
        %v494 = vld [vmem:[#allocation5 + $0x1c0] sm:$0xff]
        %v495 = vld [vmem:[#allocation5 + $0x1c8] sm:$0xff]
        %v496 = vld [vmem:[#allocation5 + $0x1d0] sm:$0xff]
        %v497 = vld [vmem:[#allocation5 + $0x1d8] sm:$0xff]
        %v498 = vld [vmem:[#allocation5 + $0x1e0] sm:$0xff]
        %v499 = vld [vmem:[#allocation5 + $0x1e8] sm:$0xff]
        %v500 = vld [vmem:[#allocation5 + $0x1f0] sm:$0xff]
        %v501 = vld [vmem:[#allocation5 + $0x1f8] sm:$0xff]
        %502 = vmatprep.subr.mxu0 %v439
        %503 = vmatpush1.msra.mxu0 %v438
        %504 = vmatprep.subr.mxu0 %v443
        %505 = vmatpush1.msra.mxu0 %v442
        %506 = vmatprep.subr.mxu0 %v447
        %507 = vmatpush1.msra.mxu0 %v446
        %508 = vmatprep.subr.mxu0 %v451
        %509 = vmatpush1.msra.mxu0 %v450
        %510 = vmatprep.subr.mxu0 %v455
        %511 = vmatpush1.msra.mxu0 %v454
        %512 = vmatprep.subr.mxu0 %v459
        %513 = vmatpush1.msra.mxu0 %v458
        %514 = vmatprep.subr.mxu0 %v463
        %515 = vmatpush1.msra.mxu0 %v462
        %516 = vmatprep.subr.mxu0 %v467
        %517 = vmatpush1.msra.mxu0 %v466
        %518 = vmatprep.subr.mxu0 %v471
        %519 = vmatpush1.msra.mxu0 %v470
        %520 = vmatprep.subr.mxu0 %v475
        %521 = vmatpush1.msra.mxu0 %v474
        %522 = vmatprep.subr.mxu0 %v479
        %523 = vmatpush1.msra.mxu0 %v478
        %524 = vmatprep.subr.mxu0 %v483
        %525 = vmatpush1.msra.mxu0 %v482
        %526 = vmatprep.subr.mxu0 %v487
        %527 = vmatpush1.msra.mxu0 %v486
        %528 = vmatprep.subr.mxu0 %v491
        %529 = vmatpush1.msra.mxu0 %v490
        %530 = vmatprep.subr.mxu0 %v495
        %531 = vmatpush1.msra.mxu0 %v494
        %532 = vmatprep.subr.mxu0 %v499
        %533 = vmatpush1.msra.mxu0 %v498
        %534 = vmatprep.subr.mxu0 0.0
        %535 = vmatpush1.msra.mxu0 0.0
        %536 = vmatprep.subr.mxu0 0.0
        %537 = vmatpush1.msra.mxu0 0.0
        %538 = vmatprep.subr.mxu0 0.0
        %539 = vmatpush1.msra.mxu0 0.0
        %540 = vmatprep.subr.mxu0 0.0
        %541 = vmatpush1.msra.mxu0 0.0
        %542 = vmatprep.subr.mxu0 0.0
        %543 = vmatpush1.msra.mxu0 0.0
        %544 = vmatprep.subr.mxu0 0.0
        %545 = vmatpush1.msra.mxu0 0.0
        %546 = vmatprep.subr.mxu0 0.0
        %547 = vmatpush1.msra.mxu0 0.0
        %548 = vmatprep.subr.mxu0 0.0
        %549 = vmatpush1.msra.mxu0 0.0
        %550 = vmatprep.subr.mxu0 0.0
        %551 = vmatpush1.msra.mxu0 0.0
        %552 = vmatprep.subr.mxu0 0.0
        %553 = vmatpush1.msra.mxu0 0.0
        %554 = vmatprep.subr.mxu0 0.0
        %555 = vmatpush1.msra.mxu0 0.0
        %556 = vmatprep.subr.mxu0 0.0
        %557 = vmatpush1.msra.mxu0 0.0
        %558 = vmatprep.subr.mxu0 0.0
        %559 = vmatpush1.msra.mxu0 0.0
        %560 = vmatprep.subr.mxu0 0.0
        %561 = vmatpush1.msra.mxu0 0.0
        %562 = vmatprep.subr.mxu0 0.0
        %563 = vmatpush1.msra.mxu0 0.0
        %564 = vmatprep.subr.mxu0 0.0
        %565 = vmatpush1.msra.mxu0 0.0
        %566 = vmatprep.mubr.f32.mxu0 0.0
        %567 = vmatmul.mubr.f32.gmra.mrb[0].mxu0 %v434
        %v568 = vpop.f32.mrb[0].mxu0
        %v569 = vadd.f32 0.0, %v568
        %v570 = vpop.f32.mrb[0].mxu0
        %v571 = vadd.f32 0.0, %v570
        %572 = vmatprep.mubr.f32.mxu0 0.0
        %573 = vmatmul.mubr.f32.gmra.mrb[0].mxu0 %v435
        %v574 = vpop.f32.mrb[0].mxu0
        %v575 = vadd.f32 0.0, %v574
        %v576 = vpop.f32.mrb[0].mxu0
        %v577 = vadd.f32 0.0, %v576
        %578 = vmatprep.mubr.f32.mxu0 0.0
        %579 = vmatmul.mubr.f32.gmra.mrb[0].mxu0 %v436
        %v580 = vpop.f32.mrb[0].mxu0
        %v581 = vadd.f32 0.0, %v580
        %v582 = vpop.f32.mrb[0].mxu0
        %v583 = vadd.f32 0.0, %v582
        %584 = vmatprep.mubr.f32.mxu0 0.0
        %585 = vmatmul.mubr.f32.gmra.mrb[0].mxu0 %v437
        %v586 = vpop.f32.mrb[0].mxu0
        %v587 = vadd.f32 0.0, %v586
        %v588 = vpop.f32.mrb[0].mxu0
        %v589 = vadd.f32 0.0, %v588
        %590 = vdwg.mxu0
        %591 = vmatprep.subr.mxu0 %v441
        %592 = vmatpush1.msra.mxu0 %v440
        %593 = vmatprep.subr.mxu0 %v445
        %594 = vmatpush1.msra.mxu0 %v444
        %595 = vmatprep.subr.mxu0 %v449
        %596 = vmatpush1.msra.mxu0 %v448
        %597 = vmatprep.subr.mxu0 %v453
        %598 = vmatpush1.msra.mxu0 %v452
        %599 = vmatprep.subr.mxu0 %v457
        %600 = vmatpush1.msra.mxu0 %v456
        %601 = vmatprep.subr.mxu0 %v461
        %602 = vmatpush1.msra.mxu0 %v460
        %603 = vmatprep.subr.mxu0 %v465
        %604 = vmatpush1.msra.mxu0 %v464
        %605 = vmatprep.subr.mxu0 %v469
        %606 = vmatpush1.msra.mxu0 %v468
        %607 = vmatprep.subr.mxu0 %v473
        %608 = vmatpush1.msra.mxu0 %v472
        %609 = vmatprep.subr.mxu0 %v477
        %610 = vmatpush1.msra.mxu0 %v476
        %611 = vmatprep.subr.mxu0 %v481
        %612 = vmatpush1.msra.mxu0 %v480
        %613 = vmatprep.subr.mxu0 %v485
        %614 = vmatpush1.msra.mxu0 %v484
        %615 = vmatprep.subr.mxu0 %v489
        %616 = vmatpush1.msra.mxu0 %v488
        %617 = vmatprep.subr.mxu0 %v493
        %618 = vmatpush1.msra.mxu0 %v492
        %619 = vmatprep.subr.mxu0 %v497
        %620 = vmatpush1.msra.mxu0 %v496
        %621 = vmatprep.subr.mxu0 %v501
        %622 = vmatpush1.msra.mxu0 %v500
        %623 = vmatprep.subr.mxu0 0.0
        %624 = vmatpush1.msra.mxu0 0.0
        %625 = vmatprep.subr.mxu0 0.0
        %626 = vmatpush1.msra.mxu0 0.0
        %627 = vmatprep.subr.mxu0 0.0
        %628 = vmatpush1.msra.mxu0 0.0
        %629 = vmatprep.subr.mxu0 0.0
        %630 = vmatpush1.msra.mxu0 0.0
        %631 = vmatprep.subr.mxu0 0.0
        %632 = vmatpush1.msra.mxu0 0.0
        %633 = vmatprep.subr.mxu0 0.0
        %634 = vmatpush1.msra.mxu0 0.0
        %635 = vmatprep.subr.mxu0 0.0
        %636 = vmatpush1.msra.mxu0 0.0
        %637 = vmatprep.subr.mxu0 0.0
        %638 = vmatpush1.msra.mxu0 0.0
        %639 = vmatprep.subr.mxu0 0.0
        %640 = vmatpush1.msra.mxu0 0.0
        %641 = vmatprep.subr.mxu0 0.0
        %642 = vmatpush1.msra.mxu0 0.0
        %643 = vmatprep.subr.mxu0 0.0
        %644 = vmatpush1.msra.mxu0 0.0
        %645 = vmatprep.subr.mxu0 0.0
        %646 = vmatpush1.msra.mxu0 0.0
        %647 = vmatprep.subr.mxu0 0.0
        %648 = vmatpush1.msra.mxu0 0.0
        %649 = vmatprep.subr.mxu0 0.0
        %650 = vmatpush1.msra.mxu0 0.0
        %651 = vmatprep.subr.mxu0 0.0
        %652 = vmatpush1.msra.mxu0 0.0
        %653 = vmatprep.subr.mxu0 0.0
        %654 = vmatpush1.msra.mxu0 0.0
        %655 = vmatprep.mubr.f32.mxu0 0.0
        %656 = vmatmul.mubr.f32.gmra.mrb[0].mxu0 %v434
        %v657 = vpop.f32.mrb[0].mxu0
        %v658 = vadd.f32 0.0, %v657
        %v659 = vpop.f32.mrb[0].mxu0
        %v660 = vadd.f32 0.0, %v659
        %661 = vmatprep.mubr.f32.mxu0 0.0
        %662 = vmatmul.mubr.f32.gmra.mrb[0].mxu0 %v435
        %v663 = vpop.f32.mrb[0].mxu0
        %v664 = vadd.f32 0.0, %v663
        %v665 = vpop.f32.mrb[0].mxu0
        %v666 = vadd.f32 0.0, %v665
        %667 = vmatprep.mubr.f32.mxu0 0.0
        %668 = vmatmul.mubr.f32.gmra.mrb[0].mxu0 %v436
        %v669 = vpop.f32.mrb[0].mxu0
        %v670 = vadd.f32 0.0, %v669
        %v671 = vpop.f32.mrb[0].mxu0
        %v672 = vadd.f32 0.0, %v671
        %673 = vmatprep.mubr.f32.mxu0 0.0
        %674 = vmatmul.mubr.f32.gmra.mrb[0].mxu0 %v437
        %v675 = vpop.f32.mrb[0].mxu0
        %v676 = vadd.f32 0.0, %v675
        %v677 = vpop.f32.mrb[0].mxu0
        %v678 = vadd.f32 0.0, %v677
        %679 = vdwg.mxu0
        %v680 = vrot.slane %v571, 6
        %v681 = vrot.slane %v577, 6
        %v682 = vrot.slane %v583, 6
        %v683 = vrot.slane %v589, 6
        %vm684 = vcmp.lt.s32.totalorder %v412, 2
        %v685 = vsel %vm684, %v682, %v683
        %v686 = vsel %vm684, %v681, %v682
        %v687 = vsel %vm684, %v680, %v681
        %v688 = vsel %vm684, %v683, %v680
        %vm689 = vcmp.ge.s32.totalorder %v412, 2
        %vm690 = vcmp.ge.s32.totalorder %v413, 2
        %vm691 = vcmp.ge.s32.totalorder %v414, 2
        %vm692 = vcmp.ge.s32.totalorder %v415, 2
        %v693 = vsel %vm689, %v688, 0.0
        %v694 = vsel %vm690, %v687, 0.0
        %v695 = vsel %vm691, %v686, 0.0
        %v696 = vsel %vm692, %v685, 0.0
        %v697 = vadd.f32 %v569, %v693
        %v698 = vadd.f32 %v575, %v694
        %v699 = vadd.f32 %v581, %v695
        %v700 = vadd.f32 %v587, %v696
        %v701 = vrot.slane %v658, 4
        %v702 = vrot.slane %v664, 4
        %v703 = vrot.slane %v670, 4
        %v704 = vrot.slane %v676, 4
        %vm705 = vcmp.lt.s32.totalorder %v412, 4
        %v706 = vsel %vm705, %v703, %v704
        %v707 = vsel %vm705, %v702, %v703
        %v708 = vsel %vm705, %v701, %v702
        %v709 = vsel %vm705, %v704, %v701
        %vm710 = vcmp.ge.s32.totalorder %v412, 4
        %vm711 = vcmp.ge.s32.totalorder %v413, 4
        %vm712 = vcmp.ge.s32.totalorder %v414, 4
        %vm713 = vcmp.ge.s32.totalorder %v415, 4
        %v714 = vsel %vm710, %v709, 0.0
        %v715 = vsel %vm711, %v708, 0.0
        %v716 = vsel %vm712, %v707, 0.0
        %v717 = vsel %vm713, %v706, 0.0
        %v718 = vadd.f32 %v697, %v714
        %v719 = vadd.f32 %v698, %v715
        %v720 = vadd.f32 %v699, %v716
        %v721 = vadd.f32 %v700, %v717
        %v722 = vld [vmem:[%s4] sm:$0x1]
        %v724 = vlaneseq
        %v725 = vshrl.u32 %v724, 7
        %v726 = vsub.s32 0, %v725
        %v727 = vrot.slane %v722, %v726
        %v729 = vadd.f32 %v718, %v727
        %v730 = vadd.f32 %v719, %v727
        %v731 = vadd.f32 %v720, %v727
        %v732 = vadd.f32 %v721, %v727
        %v733 = vmax.f32 %v729, 0.0
        %v734 = vmax.f32 %v730, 0.0
        %v735 = vmax.f32 %v731, 0.0
        %v736 = vmax.f32 %v732, 0.0
        %v737 = vld [vmem:[%s5] sm:$0x1]
        %v739 = vlaneseq
        %v740 = vshrl.u32 %v739, 7
        %v741 = vsub.s32 0, %v740
        %v742 = vrot.slane %v737, %v741
        %v744 = vmul.f32 %v733, %v742
        %v745 = vmul.f32 %v734, %v742
        %v746 = vmul.f32 %v735, %v742
        %v747 = vmul.f32 %v736, %v742
        %v748 = vld [vmem:[%s6] sm:$0x1]
        %v750 = vlaneseq
        %v751 = vshrl.u32 %v750, 7
        %v752 = vsub.s32 0, %v751
        %v753 = vrot.slane %v748, %v752
        %v755 = vadd.f32 %v744, %v753
        %v756 = vadd.f32 %v745, %v753
        %v757 = vadd.f32 %v746, %v753
        %v758 = vadd.f32 %v747, %v753
        %v759 = vld [vmem:[#allocation7] sm:$0xff]
        %v760 = vld [vmem:[#allocation7 + $0x8] sm:$0xff]
        %v761 = vld [vmem:[#allocation7 + $0x10] sm:$0xff]
        %v762 = vld [vmem:[#allocation7 + $0x18] sm:$0xff]
        %v763 = vld [vmem:[#allocation7 + $0x20] sm:$0xff]
        %v764 = vld [vmem:[#allocation7 + $0x28] sm:$0xff]
        %v765 = vld [vmem:[#allocation7 + $0x30] sm:$0xff]
        %v766 = vld [vmem:[#allocation7 + $0x38] sm:$0xff]
        %v767 = vld [vmem:[#allocation7 + $0x40] sm:$0xff]
        %v768 = vld [vmem:[#allocation7 + $0x48] sm:$0xff]
        %v769 = vld [vmem:[#allocation7 + $0x50] sm:$0xff]
        %v770 = vld [vmem:[#allocation7 + $0x58] sm:$0xff]
        %v771 = vld [vmem:[#allocation7 + $0x60] sm:$0xff]
        %v772 = vld [vmem:[#allocation7 + $0x68] sm:$0xff]
        %v773 = vld [vmem:[#allocation7 + $0x70] sm:$0xff]
        %v774 = vld [vmem:[#allocation7 + $0x78] sm:$0xff]
        %v775 = vld [vmem:[#allocation7 + $0x80] sm:$0xff]
        %v776 = vld [vmem:[#allocation7 + $0x88] sm:$0xff]
        %v777 = vld [vmem:[#allocation7 + $0x90] sm:$0xff]
        %v778 = vld [vmem:[#allocation7 + $0x98] sm:$0xff]
        %v779 = vld [vmem:[#allocation7 + $0xa0] sm:$0xff]
        %v780 = vld [vmem:[#allocation7 + $0xa8] sm:$0xff]
        %v781 = vld [vmem:[#allocation7 + $0xb0] sm:$0xff]
        %v782 = vld [vmem:[#allocation7 + $0xb8] sm:$0xff]
        %v783 = vld [vmem:[#allocation7 + $0xc0] sm:$0xff]
        %v784 = vld [vmem:[#allocation7 + $0xc8] sm:$0xff]
        %v785 = vld [vmem:[#allocation7 + $0xd0] sm:$0xff]
        %v786 = vld [vmem:[#allocation7 + $0xd8] sm:$0xff]
        %v787 = vld [vmem:[#allocation7 + $0xe0] sm:$0xff]
        %v788 = vld [vmem:[#allocation7 + $0xe8] sm:$0xff]
        %v789 = vld [vmem:[#allocation7 + $0xf0] sm:$0xff]
        %v790 = vld [vmem:[#allocation7 + $0xf8] sm:$0xff]
        %v791 = vld [vmem:[#allocation7 + $0x100] sm:$0xff]
        %v792 = vld [vmem:[#allocation7 + $0x108] sm:$0xff]
        %v793 = vld [vmem:[#allocation7 + $0x110] sm:$0xff]
        %v794 = vld [vmem:[#allocation7 + $0x118] sm:$0xff]
        %v795 = vld [vmem:[#allocation7 + $0x120] sm:$0xff]
        %v796 = vld [vmem:[#allocation7 + $0x128] sm:$0xff]
        %v797 = vld [vmem:[#allocation7 + $0x130] sm:$0xff]
        %v798 = vld [vmem:[#allocation7 + $0x138] sm:$0xff]
        %v799 = vld [vmem:[#allocation7 + $0x140] sm:$0xff]
        %v800 = vld [vmem:[#allocation7 + $0x148] sm:$0xff]
        %v801 = vld [vmem:[#allocation7 + $0x150] sm:$0xff]
        %v802 = vld [vmem:[#allocation7 + $0x158] sm:$0xff]
        %v803 = vld [vmem:[#allocation7 + $0x160] sm:$0xff]
        %v804 = vld [vmem:[#allocation7 + $0x168] sm:$0xff]
        %v805 = vld [vmem:[#allocation7 + $0x170] sm:$0xff]
        %v806 = vld [vmem:[#allocation7 + $0x178] sm:$0xff]
        %807 = vmatprep.subr.mxu0 %v760
        %808 = vmatpush1.msra.mxu0 %v759
        %809 = vmatprep.subr.mxu0 %v763
        %810 = vmatpush1.msra.mxu0 %v762
        %811 = vmatprep.subr.mxu0 %v766
        %812 = vmatpush1.msra.mxu0 %v765
        %813 = vmatprep.subr.mxu0 %v769
        %814 = vmatpush1.msra.mxu0 %v768
        %815 = vmatprep.subr.mxu0 %v772
        %816 = vmatpush1.msra.mxu0 %v771
        %817 = vmatprep.subr.mxu0 %v775
        %818 = vmatpush1.msra.mxu0 %v774
        %819 = vmatprep.subr.mxu0 %v778
        %820 = vmatpush1.msra.mxu0 %v777
        %821 = vmatprep.subr.mxu0 %v781
        %822 = vmatpush1.msra.mxu0 %v780
        %823 = vmatprep.subr.mxu0 %v784
        %824 = vmatpush1.msra.mxu0 %v783
        %825 = vmatprep.subr.mxu0 %v787
        %826 = vmatpush1.msra.mxu0 %v786
        %827 = vmatprep.subr.mxu0 %v790
        %828 = vmatpush1.msra.mxu0 %v789
        %829 = vmatprep.subr.mxu0 %v793
        %830 = vmatpush1.msra.mxu0 %v792
        %831 = vmatprep.subr.mxu0 %v796
        %832 = vmatpush1.msra.mxu0 %v795
        %833 = vmatprep.subr.mxu0 %v799
        %834 = vmatpush1.msra.mxu0 %v798
        %835 = vmatprep.subr.mxu0 %v802
        %836 = vmatpush1.msra.mxu0 %v801
        %837 = vmatprep.subr.mxu0 %v805
        %838 = vmatpush1.msra.mxu0 %v804
        %839 = vmatprep.subr.mxu0 0.0
        %840 = vmatpush1.msra.mxu0 0.0
        %841 = vmatprep.subr.mxu0 0.0
        %842 = vmatpush1.msra.mxu0 0.0
        %843 = vmatprep.subr.mxu0 0.0
        %844 = vmatpush1.msra.mxu0 0.0
        %845 = vmatprep.subr.mxu0 0.0
        %846 = vmatpush1.msra.mxu0 0.0
        %847 = vmatprep.subr.mxu0 0.0
        %848 = vmatpush1.msra.mxu0 0.0
        %849 = vmatprep.subr.mxu0 0.0
        %850 = vmatpush1.msra.mxu0 0.0
        %851 = vmatprep.subr.mxu0 0.0
        %852 = vmatpush1.msra.mxu0 0.0
        %853 = vmatprep.subr.mxu0 0.0
        %854 = vmatpush1.msra.mxu0 0.0
        %855 = vmatprep.subr.mxu0 0.0
        %856 = vmatpush1.msra.mxu0 0.0
        %857 = vmatprep.subr.mxu0 0.0
        %858 = vmatpush1.msra.mxu0 0.0
        %859 = vmatprep.subr.mxu0 0.0
        %860 = vmatpush1.msra.mxu0 0.0
        %861 = vmatprep.subr.mxu0 0.0
        %862 = vmatpush1.msra.mxu0 0.0
        %863 = vmatprep.subr.mxu0 0.0
        %864 = vmatpush1.msra.mxu0 0.0
        %865 = vmatprep.subr.mxu0 0.0
        %866 = vmatpush1.msra.mxu0 0.0
        %867 = vmatprep.subr.mxu0 0.0
        %868 = vmatpush1.msra.mxu0 0.0
        %869 = vmatprep.subr.mxu0 0.0
        %870 = vmatpush1.msra.mxu0 0.0
        %871 = vmatprep.mubr.f32.mxu0 0.0
        %872 = vmatmul.mubr.f32.gmra.mrb[0].mxu0 %v755
        %v873 = vpop.f32.mrb[0].mxu0
        %v874 = vadd.f32 0.0, %v873
        %v875 = vpop.f32.mrb[0].mxu0
        %v876 = vadd.f32 0.0, %v875
        %877 = vmatprep.mubr.f32.mxu0 0.0
        %878 = vmatmul.mubr.f32.gmra.mrb[0].mxu0 %v756
        %v879 = vpop.f32.mrb[0].mxu0
        %v880 = vadd.f32 0.0, %v879
        %v881 = vpop.f32.mrb[0].mxu0
        %v882 = vadd.f32 0.0, %v881
        %883 = vmatprep.mubr.f32.mxu0 0.0
        %884 = vmatmul.mubr.f32.gmra.mrb[0].mxu0 %v757
        %v885 = vpop.f32.mrb[0].mxu0
        %v886 = vadd.f32 0.0, %v885
        %v887 = vpop.f32.mrb[0].mxu0
        %v888 = vadd.f32 0.0, %v887
        %889 = vmatprep.mubr.f32.mxu0 0.0
        %890 = vmatmul.mubr.f32.gmra.mrb[0].mxu0 %v758
        %v891 = vpop.f32.mrb[0].mxu0
        %v892 = vadd.f32 0.0, %v891
        %v893 = vpop.f32.mrb[0].mxu0
        %v894 = vadd.f32 0.0, %v893
        %895 = vdwg.mxu0
        %896 = vmatprep.subr.mxu0 0.0
        %897 = vmatpush1.msra.mxu0 %v761
        %898 = vmatprep.subr.mxu0 0.0
        %899 = vmatpush1.msra.mxu0 %v764
        %900 = vmatprep.subr.mxu0 0.0
        %901 = vmatpush1.msra.mxu0 %v767
        %902 = vmatprep.subr.mxu0 0.0
        %903 = vmatpush1.msra.mxu0 %v770
        %904 = vmatprep.subr.mxu0 0.0
        %905 = vmatpush1.msra.mxu0 %v773
        %906 = vmatprep.subr.mxu0 0.0
        %907 = vmatpush1.msra.mxu0 %v776
        %908 = vmatprep.subr.mxu0 0.0
        %909 = vmatpush1.msra.mxu0 %v779
        %910 = vmatprep.subr.mxu0 0.0
        %911 = vmatpush1.msra.mxu0 %v782
        %912 = vmatprep.subr.mxu0 0.0
        %913 = vmatpush1.msra.mxu0 %v785
        %914 = vmatprep.subr.mxu0 0.0
        %915 = vmatpush1.msra.mxu0 %v788
        %916 = vmatprep.subr.mxu0 0.0
        %917 = vmatpush1.msra.mxu0 %v791
        %918 = vmatprep.subr.mxu0 0.0
        %919 = vmatpush1.msra.mxu0 %v794
        %920 = vmatprep.subr.mxu0 0.0
        %921 = vmatpush1.msra.mxu0 %v797
        %922 = vmatprep.subr.mxu0 0.0
        %923 = vmatpush1.msra.mxu0 %v800
        %924 = vmatprep.subr.mxu0 0.0
        %925 = vmatpush1.msra.mxu0 %v803
        %926 = vmatprep.subr.mxu0 0.0
        %927 = vmatpush1.msra.mxu0 %v806
        %928 = vmatprep.subr.mxu0 0.0
        %929 = vmatpush1.msra.mxu0 0.0
        %930 = vmatprep.subr.mxu0 0.0
        %931 = vmatpush1.msra.mxu0 0.0
        %932 = vmatprep.subr.mxu0 0.0
        %933 = vmatpush1.msra.mxu0 0.0
        %934 = vmatprep.subr.mxu0 0.0
        %935 = vmatpush1.msra.mxu0 0.0
        %936 = vmatprep.subr.mxu0 0.0
        %937 = vmatpush1.msra.mxu0 0.0
        %938 = vmatprep.subr.mxu0 0.0
        %939 = vmatpush1.msra.mxu0 0.0
        %940 = vmatprep.subr.mxu0 0.0
        %941 = vmatpush1.msra.mxu0 0.0
        %942 = vmatprep.subr.mxu0 0.0
        %943 = vmatpush1.msra.mxu0 0.0
        %944 = vmatprep.subr.mxu0 0.0
        %945 = vmatpush1.msra.mxu0 0.0
        %946 = vmatprep.subr.mxu0 0.0
        %947 = vmatpush1.msra.mxu0 0.0
        %948 = vmatprep.subr.mxu0 0.0
        %949 = vmatpush1.msra.mxu0 0.0
        %950 = vmatprep.subr.mxu0 0.0
        %951 = vmatpush1.msra.mxu0 0.0
        %952 = vmatprep.subr.mxu0 0.0
        %953 = vmatpush1.msra.mxu0 0.0
        %954 = vmatprep.subr.mxu0 0.0
        %955 = vmatpush1.msra.mxu0 0.0
        %956 = vmatprep.subr.mxu0 0.0
        %957 = vmatpush1.msra.mxu0 0.0
        %958 = vmatprep.subr.mxu0 0.0
        %959 = vmatpush1.msra.mxu0 0.0
        %960 = vmatprep.mubr.f32.mxu0 0.0
        %961 = vmatmul.mubr.f32.gmra.mrb[0].mxu0 %v755
        %v962 = vpop.f32.mrb[0].mxu0
        %v963 = vadd.f32 0.0, %v962
        %v964 = vpop.f32.mrb[0].mxu0
        %965 = vmatprep.mubr.f32.mxu0 0.0
        %966 = vmatmul.mubr.f32.gmra.mrb[0].mxu0 %v756
        %v967 = vpop.f32.mrb[0].mxu0
        %v968 = vadd.f32 0.0, %v967
        %v969 = vpop.f32.mrb[0].mxu0
        %970 = vmatprep.mubr.f32.mxu0 0.0
        %971 = vmatmul.mubr.f32.gmra.mrb[0].mxu0 %v757
        %v972 = vpop.f32.mrb[0].mxu0
        %v973 = vadd.f32 0.0, %v972
        %v974 = vpop.f32.mrb[0].mxu0
        %975 = vmatprep.mubr.f32.mxu0 0.0
        %976 = vmatmul.mubr.f32.gmra.mrb[0].mxu0 %v758
        %v977 = vpop.f32.mrb[0].mxu0
        %v978 = vadd.f32 0.0, %v977
        %v979 = vpop.f32.mrb[0].mxu0
        %980 = vdwg.mxu0
        %v981 = vrot.slane %v876, 6
        %v982 = vrot.slane %v882, 6
        %v983 = vrot.slane %v888, 6
        %v984 = vrot.slane %v894, 6
        %v985 = vsel %vm684, %v983, %v984
        %v986 = vsel %vm684, %v982, %v983
        %v987 = vsel %vm684, %v981, %v982
        %v988 = vsel %vm684, %v984, %v981
        %v989 = vsel %vm689, %v988, 0.0
        %v990 = vsel %vm690, %v987, 0.0
        %v991 = vsel %vm691, %v986, 0.0
        %v992 = vsel %vm692, %v985, 0.0
        %v993 = vadd.f32 %v874, %v989
        %v994 = vadd.f32 %v880, %v990
        %v995 = vadd.f32 %v886, %v991
        %v996 = vadd.f32 %v892, %v992
        %v997 = vrot.slane %v963, 4
        %v998 = vrot.slane %v968, 4
        %v999 = vrot.slane %v973, 4
        %v1000 = vrot.slane %v978, 4
        %v1001 = vsel %vm705, %v999, %v1000
        %v1002 = vsel %vm705, %v998, %v999
        %v1003 = vsel %vm705, %v997, %v998
        %v1004 = vsel %vm705, %v1000, %v997
        %v1005 = vsel %vm710, %v1004, 0.0
        %v1006 = vsel %vm711, %v1003, 0.0
        %v1007 = vsel %vm712, %v1002, 0.0
        %v1008 = vsel %vm713, %v1001, 0.0
        %v1009 = vadd.f32 %v993, %v1005
        %v1010 = vadd.f32 %v994, %v1006
        %v1011 = vadd.f32 %v995, %v1007
        %v1012 = vadd.f32 %v996, %v1008
        %v1013 = vld [vmem:[%s8] sm:$0x1]
        %v1015 = vlaneseq
        %v1016 = vshrl.u32 %v1015, 7
        %v1017 = vsub.s32 0, %v1016
        %v1018 = vrot.slane %v1013, %v1017
        %v1020 = vadd.f32 %v1009, %v1018
        %v1021 = vadd.f32 %v1010, %v1018
        %v1022 = vadd.f32 %v1011, %v1018
        %v1023 = vadd.f32 %v1012, %v1018
        %v1024 = vmax.f32 %v1020, 0.0
        %v1025 = vmax.f32 %v1021, 0.0
        %v1026 = vmax.f32 %v1022, 0.0
        %v1027 = vmax.f32 %v1023, 0.0
        %v1028 = vld [vmem:[%s9] sm:$0x1]
        %v1030 = vlaneseq
        %v1031 = vshrl.u32 %v1030, 7
        %v1032 = vsub.s32 0, %v1031
        %v1033 = vrot.slane %v1028, %v1032
        %v1035 = vadd.f32 %v660, %v1033
        %v1036 = vadd.f32 %v666, %v1033
        %v1037 = vadd.f32 %v672, %v1033
        %v1038 = vadd.f32 %v678, %v1033
        %v1039 = vadd.f32 %v1024, %v1035
        %v1040 = vadd.f32 %v1025, %v1036
        %v1041 = vadd.f32 %v1026, %v1037
        %v1042 = vadd.f32 %v1027, %v1038
        %v1043 = vmax.f32 %v1039, 0.0
        %v1044 = vmax.f32 %v1040, 0.0
        %v1045 = vmax.f32 %v1041, 0.0
        %v1046 = vmax.f32 %v1042, 0.0
        %1047 = vst [vmem:[%s406] sm:$0xff] %v1043
        %1048 = vst [vmem:[%s406 + $0x8] sm:$0xff] %v1044
        %1049 = vst [vmem:[%s406 + $0x10] sm:$0xff] %v1045
        %1050 = vst [vmem:[%s406 + $0x18] sm:$0xff] %v1046
        %s1051 = sand.u32 %s251, 1
        %s1052 = scalar_lea.sflag [#allocation4], %s1051
        %s1053 = sand.u32 %s251, 1
        %s1054 = smul.addr %s1053, 32
        %s1055 = scalar_lea.vmem [#allocation8], %s1054
        // Predicated region
        $region73: #{tpu_custom_call.1} parent=59 // pred_check
          %p1056 = pneg %p261
        $region74: #{tpu_custom_call.1} parent=59 // pred_check_branch
          %1058 = sbr.rel (%p1056) target = $region76
        $region75: #{tpu_custom_call.1} parent=59 // pred_region
          %s1060 = ssub.s32 512, 512
          %1061 = vsyncadd %s1052, %s1060
          %s1062 = smul.addr %s28, 4
          %s1063 = smul.addr %s1062, 128
          %s1064 = scalar_lea.hbm %s10, %s1063
          %s1065 = sshll.u32 %s1055, 4
          %s1066 = int_to_ptr.vmem [resolvable:$true] %s1065
          %1071 = dma.vmem_to_hbm [thread:$0]  %s1066, 512, %s1064, %s1052, 128, 128, 8
        $region76: #{tpu_custom_call.1} parent=59 // pred_fallthru
          _
      $region60: #{tpu_custom_call.1} parent=5 // pred_fallthru
        _
      %p1072 = scmp.le.s32.totalorder 2, %s23
      // Predicated region
      $region77: #{tpu_custom_call.1} parent=5 // pred_check
        %p1073 = pneg %p1072
      $region78: #{tpu_custom_call.1} parent=5 // pred_check_branch
        %1075 = sbr.rel (%p1073) target = $region80
      $region79: #{tpu_custom_call.1} parent=5 // pred_region
        %s1076 = ssub.s32 %s23, 2
        // Predicated region
        $region81: #{tpu_custom_call.1} parent=79 // pred_check
          %p1077 = pneg %p267
        $region82: #{tpu_custom_call.1} parent=79 // pred_check_branch
          %1079 = sbr.rel (%p1077) target = $region84
        $region83: #{tpu_custom_call.1} parent=79 // pred_region
          %s1080 = sand.u32 %s252, 1
          %s1081 = scalar_lea.sflag [#allocation4], %s1080
          %s1082 = sand.u32 %s252, 1
          %s1083 = smul.addr %s1082, 32
          %s1084 = scalar_lea.vmem [#allocation8], %s1083
          %1085 = dma.done %s1081, 512
        $region84: #{tpu_custom_call.1} parent=79 // pred_fallthru
          _
      $region80: #{tpu_custom_call.1} parent=5 // pred_fallthru
        _
    $region6: #{tpu_custom_call.1} parent=1 // loop_footer
      %s27 = sadd.s32 1, %s23
    $region7: #{tpu_custom_call.1} parent=1 // loop_footer_branch
      %22 = sbr.rel target = $region3
    $region8: #{tpu_custom_call.1} parent=1 // loop_exit
      _
    %1086 = vsyncpa [#allocation3], 1
    %s1087 = scalar_lea.sflag [#allocation3], 1
    %1088 = vsyncpa %s1087, 1
    %1089 = vsyncpa [#allocation6], 1
    %1090 = vsyncpa [#allocation4], 1
    %s1091 = scalar_lea.sflag [#allocation4], 1
    %1092 = vsyncpa %s1091, 1

</llo_original>
